<compile_context>
chip_gen: v6e
topology: v6e:2x2x1
jax: 0.10.0
libtpu: 0.0.40
codegen_flags: <defaults>
</compile_context>

<pallas_src>
import math
from functools import partial

import jax
import jax.numpy as jnp
from jax.experimental import pallas as pl
from jax.experimental.pallas import tpu as pltpu

NORM_EPS = 1e-6
LANE = 128


def _round_up(x, m):
    return (x + m - 1) // m * m


# ----------------------------- Pallas kernels ------------------------------

def _conv1_ln_gelu_kernel(p_ref, w_ref, b_ref, g_ref, beta_ref, o_ref, *, c_real):
    # p_ref: (TM, K1) bf16   w_ref: (K1, CP) bf16
    # b/g/beta: (1, CP) f32  o_ref: (TM, CP) bf16
    y = jnp.dot(p_ref[...], w_ref[...], preferred_element_type=jnp.float32)
    y = y + b_ref[...]
    # LayerNorm2d over channels. Padded channels are exactly zero (zero weight
    # columns + zero bias), so plain sums already equal the real-channel sums;
    # one-pass stats: var = E[y^2] - mean^2 over the *real* channel count.
    inv_c = jnp.float32(1.0 / c_real)
    mean = jnp.sum(y, axis=-1, keepdims=True) * inv_c
    ex2 = jnp.sum(y * y, axis=-1, keepdims=True) * inv_c
    var = jnp.maximum(ex2 - mean * mean, 0.0)
    yn = (y - mean) * jax.lax.rsqrt(var + NORM_EPS)
    yn = yn * g_ref[...] + beta_ref[...]          # padded channels -> exactly 0
    # exact (erf) GELU, matching torch.nn.GELU default
    inv_sqrt2 = jnp.float32(1.0 / math.sqrt(2.0))
    out = 0.5 * yn * (1.0 + jax.lax.erf(yn * inv_sqrt2))
    o_ref[...] = out.astype(o_ref.dtype)


def _conv2_kernel(y_ref, w_ref, b_ref, o_ref, *, wp):
    # y_ref: (1, LP, CP) bf16  -- spatially zero-padded image, rows flattened
    # w_ref: (9, CP, CP) bf16  -- tap-major (kh*3 + kw)
    # b_ref: (1, CP) f32       o_ref: (1, MO, CP) f32
    mo = o_ref.shape[1]
    cp = o_ref.shape[2]
    acc = jnp.zeros((mo, cp), jnp.float32)
    for kh in range(3):
        for kw in range(3):
            s = kh * wp + kw                       # static flat row shift
            ys = y_ref[0, pl.ds(s, mo), :]         # (MO, CP) bf16
            acc = acc + jnp.dot(ys, w_ref[kh * 3 + kw],
                                preferred_element_type=jnp.float32)
    o_ref[0] = acc + b_ref[...]


# ------------------------------- Glue (JAX) --------------------------------

def _im2col_s2(x_nhwc):
    """3x3 / stride 2 / pad 1 patches: (N*Ho*Wo, 9*Cin), ordered (kh, kw, cin)."""
    N, H, W, C = x_nhwc.shape
    xp = jnp.pad(x_nhwc, ((0, 0), (1, 1), (1, 1), (0, 0)))
    Ho = (H - 1) // 2 + 1
    Wo = (W - 1) // 2 + 1
    cols = []
    for kh in range(3):
        for kw in range(3):
            cols.append(xp[:, kh:kh + 2 * Ho:2, kw:kw + 2 * Wo:2, :])
    patches = jnp.stack(cols, axis=3)              # (N, Ho, Wo, 9, C)
    return patches.reshape(N * Ho * Wo, 9 * C), Ho, Wo


def init_stem_params(key, in_chs, out_chs):
    """Matches _init_conv: normal(0, sqrt(2/fan_out)), bias = 0."""
    k1, k2 = jax.random.split(key)
    fan_out = 3 * 3 * out_chs
    std = math.sqrt(2.0 / fan_out)
    # weights stored (kh, kw, Cin, Cout) so they flatten to match im2col order
    w1 = std * jax.random.normal(k1, (3, 3, in_chs, out_chs), jnp.float32)
    b1 = jnp.zeros((out_chs,), jnp.float32)
    w2 = std * jax.random.normal(k2, (3, 3, out_chs, out_chs), jnp.float32)
    b2 = jnp.zeros((out_chs,), jnp.float32)
    ln_w = jnp.ones((out_chs,), jnp.float32)
    ln_b = jnp.zeros((out_chs,), jnp.float32)
    return dict(w1=w1, b1=b1, w2=w2, b2=b2, ln_w=ln_w, ln_b=ln_b)


def stem_forward(x_nchw, params):
    """Forward pass. Input/output are NCHW to match the PyTorch module."""
    N, Cin, H, W = x_nchw.shape
    Cout = params["w1"].shape[-1]
    CP = _round_up(Cout, LANE)                     # lane-dense channel padding
    x = jnp.transpose(x_nchw, (0, 2, 3, 1))        # NCHW -> NHWC

    # ---------- conv1 (3x3, s2, p1) + LayerNorm2d + GELU, fused & tiled -----
    p1, Ho, Wo = _im2col_s2(x)
    p1 = p1.astype(jnp.bfloat16)
    M1, K1 = p1.shape
    w1 = params["w1"].reshape(K1, Cout)
    w1p = jnp.pad(w1, ((0, 0), (0, CP - Cout))).astype(jnp.bfloat16)
    b1p = jnp.pad(params["b1"], (0, CP - Cout)).reshape(1, CP)
    g1p = jnp.pad(params["ln_w"], (0, CP - Cout)).reshape(1, CP)
    be1p = jnp.pad(params["ln_b"], (0, CP - Cout)).reshape(1, CP)

    TM = M1 if M1 <= 1024 else 1024                # biggest tile that fits VMEM
    cost1 = pl.CostEstimate(
        flops=2 * M1 * K1 * CP,
        transcendentals=2 * M1 * CP,
        bytes_accessed=p1.size * 2 + w1p.size * 2 + 3 * CP * 4 + M1 * CP * 2,
    )
    y1 = pl.pallas_call(
        partial(_conv1_ln_gelu_kernel, c_real=Cout),
        grid=(pl.cdiv(M1, TM),),
        in_specs=[
            pl.BlockSpec((TM, K1), lambda i: (i, 0)),
            pl.BlockSpec((K1, CP), lambda i: (0, 0)),   # resident
            pl.BlockSpec((1, CP), lambda i: (0, 0)),
            pl.BlockSpec((1, CP), lambda i: (0, 0)),
            pl.BlockSpec((1, CP), lambda i: (0, 0)),
        ],
        out_specs=pl.BlockSpec((TM, CP), lambda i: (i, 0)),
        out_shape=jax.ShapeDtypeStruct((M1, CP), jnp.bfloat16),
        compiler_params=pltpu.CompilerParams(
            dimension_semantics=("parallel",)),
        cost_estimate=cost1,
    )(p1, w1p, b1p, g1p, be1p)
    y1 = y1.reshape(N, Ho, Wo, CP)

    # ---------- conv2 (3x3, s1, p1): 9-tap shifted matmuls, no im2col -------
    # Pad 1 row top / 2 rows bottom, 1 col each side, flatten spatial dims.
    # For output flat index f = h*Wp + w, tap (kh,kw) reads flat row
    # f + kh*Wp + kw; the extra Wp columns/rows are garbage and sliced off.
    Wp, Hp = Wo + 2, Ho + 3
    y1pf = jnp.pad(y1, ((0, 0), (1, 2), (1, 1), (0, 0))).reshape(N, Hp * Wp, CP)
    LP = Hp * Wp
    MO = Ho * Wp

    w2p = jnp.pad(params["w2"],
                  ((0, 0), (0, 0), (0, CP - Cout), (0, CP - Cout)))
    w2p = w2p.reshape(9, CP, CP).astype(jnp.bfloat16)
    b2p = jnp.pad(params["b2"], (0, CP - Cout)).reshape(1, CP)

    cost2 = pl.CostEstimate(
        flops=2 * 9 * N * MO * CP * CP,
        transcendentals=0,
        bytes_accessed=y1pf.size * 2 + w2p.size * 2 + N * MO * CP * 4,
    )
    y2f = pl.pallas_call(
        partial(_conv2_kernel, wp=Wp),
        grid=(N,),
        in_specs=[
            pl.BlockSpec((1, LP, CP), lambda n: (n, 0, 0)),
            pl.BlockSpec((9, CP, CP), lambda n: (0, 0, 0)),  # resident
            pl.BlockSpec((1, CP), lambda n: (0, 0)),
        ],
        out_specs=pl.BlockSpec((1, MO, CP), lambda n: (n, 0, 0)),
        out_shape=jax.ShapeDtypeStruct((N, MO, CP), jnp.float32),
        compiler_params=pltpu.CompilerParams(
            dimension_semantics=("parallel",),
            vmem_limit_bytes=48 * 1024 * 1024),   # stays under v7x's 64 MiB
        cost_estimate=cost2,
    )(y1pf, w2p, b2p)

    # drop garbage columns + padded channels, back to NCHW
    y2 = y2f.reshape(N, Ho, Wp, CP)[:, :, :Wo, :Cout]
    return jnp.transpose(y2, (0, 3, 1, 2))


if __name__ == "__main__":
    key = jax.random.PRNGKey(0)
    k_x, k_p = jax.random.split(key)

    N, in_chs, H, W = 2, 4, 16, 16
    out_chs = 32

    x = jax.random.normal(k_x, (N, in_chs, H, W), jnp.float32)
    params = init_stem_params(k_p, in_chs, out_chs)

    fwd = jax.jit(stem_forward)
    out = fwd(x, params)
    out = jax.block_until_ready(out)

    assert out.shape == (N, out_chs, H // 2, W // 2), out.shape
    assert jnp.all(jnp.isfinite(out))
    print("KERNEL_OK")
</pallas_src>

<mosaic_0001>
module attributes {stable_mosaic.version = 11 : i64} {
  func.func @_conv1_ln_gelu_kernel(%arg0: i32, %arg1: memref<128x36xbf16, #tpu.memory_space<vmem>>, %arg2: memref<36x128xbf16, #tpu.memory_space<vmem>>, %arg3: memref<1x128xf32, #tpu.memory_space<vmem>>, %arg4: memref<1x128xf32, #tpu.memory_space<vmem>>, %arg5: memref<1x128xf32, #tpu.memory_space<vmem>>, %arg6: memref<128x128xbf16, #tpu.memory_space<vmem>>) attributes {dimension_semantics = [#tpu.dimension_semantics<parallel>], iteration_bounds = array<i64: 1>, scalar_prefetch = 0 : i64, scratch_operands = 0 : i64, tpu.core_type = #tpu.core_type<tc>, window_params = [{transform_indices = @transform_0, window_bounds = array<i64: 128, 36>}, {pipeline_mode = #tpu.pipeline_mode<synchronous>, transform_indices = @transform_1, window_bounds = array<i64: 36, 128>}, {pipeline_mode = #tpu.pipeline_mode<synchronous>, transform_indices = @transform_2, window_bounds = array<i64: 1, 128>}, {pipeline_mode = #tpu.pipeline_mode<synchronous>, transform_indices = @transform_3, window_bounds = array<i64: 1, 128>}, {pipeline_mode = #tpu.pipeline_mode<synchronous>, transform_indices = @transform_4, window_bounds = array<i64: 1, 128>}, {transform_indices = @transform_5, window_bounds = array<i64: 128, 128>}]} {
    %c0 = arith.constant 0 : index
    %c0_0 = arith.constant 0 : index
    %0 = vector.load %arg1[%c0, %c0_0] : memref<128x36xbf16, #tpu.memory_space<vmem>>, vector<128x36xbf16>
    %c0_1 = arith.constant 0 : index
    %c0_2 = arith.constant 0 : index
    %1 = vector.load %arg2[%c0_1, %c0_2] : memref<36x128xbf16, #tpu.memory_space<vmem>>, vector<36x128xbf16>
    %cst = arith.constant dense<0.000000e+00> : vector<128x128xf32>
    %2 = tpu.matmul %0, %1, %cst {dimension_numbers = #tpu.dot_dimension_numbers<[1], [0], [0], [1], [0, 0, 1, 1], [], []>} : vector<128x36xbf16>, vector<36x128xbf16>, vector<128x128xf32> -> vector<128x128xf32>
    %c0_3 = arith.constant 0 : index
    %c0_4 = arith.constant 0 : index
    %3 = vector.load %arg3[%c0_3, %c0_4] : memref<1x128xf32, #tpu.memory_space<vmem>>, vector<1x128xf32>
    %4 = vector.broadcast %3 : vector<1x128xf32> to vector<128x128xf32>
    %5 = arith.addf %2, %4 : vector<128x128xf32>
    %cst_5 = arith.constant dense<0.000000e+00> : vector<128xf32>
    %6 = vector.multi_reduction <add>, %5, %cst_5 [1] : vector<128x128xf32> to vector<128xf32>
    %7 = vector.shape_cast %6 : vector<128xf32> to vector<128x1xf32>
    %cst_6 = arith.constant 3.125000e-02 : f32
    %8 = vector.broadcast %cst_6 : f32 to vector<128x1xf32>
    %9 = arith.mulf %7, %8 : vector<128x1xf32>
    %10 = arith.mulf %5, %5 : vector<128x128xf32>
    %cst_7 = arith.constant dense<0.000000e+00> : vector<128xf32>
    %11 = vector.multi_reduction <add>, %10, %cst_7 [1] : vector<128x128xf32> to vector<128xf32>
    %12 = vector.shape_cast %11 : vector<128xf32> to vector<128x1xf32>
    %cst_8 = arith.constant 3.125000e-02 : f32
    %13 = vector.broadcast %cst_8 : f32 to vector<128x1xf32>
    %14 = arith.mulf %12, %13 : vector<128x1xf32>
    %15 = arith.mulf %9, %9 : vector<128x1xf32>
    %16 = arith.subf %14, %15 : vector<128x1xf32>
    %cst_9 = arith.constant 0.000000e+00 : f32
    %17 = vector.broadcast %cst_9 : f32 to vector<128x1xf32>
    %18 = arith.maximumf %16, %17 : vector<128x1xf32>
    %19 = vector.broadcast %9 : vector<128x1xf32> to vector<128x128xf32>
    %20 = arith.subf %5, %19 : vector<128x128xf32>
    %cst_10 = arith.constant 9.99999997E-7 : f32
    %21 = vector.broadcast %cst_10 : f32 to vector<128x1xf32>
    %22 = arith.addf %18, %21 : vector<128x1xf32>
    %23 = math.rsqrt %22 : vector<128x1xf32>
    %24 = vector.broadcast %23 : vector<128x1xf32> to vector<128x128xf32>
    %25 = arith.mulf %20, %24 : vector<128x128xf32>
    %c0_11 = arith.constant 0 : index
    %c0_12 = arith.constant 0 : index
    %26 = vector.load %arg4[%c0_11, %c0_12] : memref<1x128xf32, #tpu.memory_space<vmem>>, vector<1x128xf32>
    %27 = vector.broadcast %26 : vector<1x128xf32> to vector<128x128xf32>
    %28 = arith.mulf %25, %27 : vector<128x128xf32>
    %c0_13 = arith.constant 0 : index
    %c0_14 = arith.constant 0 : index
    %29 = vector.load %arg5[%c0_13, %c0_14] : memref<1x128xf32, #tpu.memory_space<vmem>>, vector<1x128xf32>
    %30 = vector.broadcast %29 : vector<1x128xf32> to vector<128x128xf32>
    %31 = arith.addf %28, %30 : vector<128x128xf32>
    %cst_15 = arith.constant 5.000000e-01 : f32
    %32 = vector.broadcast %cst_15 : f32 to vector<128x128xf32>
    %33 = arith.mulf %32, %31 : vector<128x128xf32>
    %cst_16 = arith.constant 0.707106769 : f32
    %34 = vector.broadcast %cst_16 : f32 to vector<128x128xf32>
    %35 = arith.mulf %31, %34 : vector<128x128xf32>
    %36 = math.erf %35 : vector<128x128xf32>
    %cst_17 = arith.constant 1.000000e+00 : f32
    %37 = vector.broadcast %cst_17 : f32 to vector<128x128xf32>
    %38 = arith.addf %37, %36 : vector<128x128xf32>
    %39 = arith.mulf %33, %38 : vector<128x128xf32>
    %40 = arith.truncf %39 : vector<128x128xf32> to vector<128x128xbf16>
    %c0_18 = arith.constant 0 : index
    %c0_19 = arith.constant 0 : index
    %41 = vector.load %arg6[%c0_18, %c0_19] : memref<128x128xbf16, #tpu.memory_space<vmem>>, vector<128x128xbf16>
    tpu.vector_store %arg6[%c0_18, %c0_19], %40 {strides = array<i32>} : memref<128x128xbf16, #tpu.memory_space<vmem>>, vector<128x128xbf16>,
    return
  }
  func.func @transform_0(%arg0: i32) -> (i32, i32) {
    %c0_i32 = arith.constant 0 : i32
    %c0_i32_0 = arith.constant 0 : i32
    return %arg0, %c0_i32 : i32, i32
  }
  func.func @transform_1(%arg0: i32) -> (i32, i32) {
    %c0_i32 = arith.constant 0 : i32
    %c0_i32_0 = arith.constant 0 : i32
    %c0_i32_1 = arith.constant 0 : i32
    return %c0_i32, %c0_i32_0 : i32, i32
  }
  func.func @transform_2(%arg0: i32) -> (i32, i32) {
    %c0_i32 = arith.constant 0 : i32
    %c0_i32_0 = arith.constant 0 : i32
    %c0_i32_1 = arith.constant 0 : i32
    return %c0_i32, %c0_i32_0 : i32, i32
  }
  func.func @transform_3(%arg0: i32) -> (i32, i32) {
    %c0_i32 = arith.constant 0 : i32
    %c0_i32_0 = arith.constant 0 : i32
    %c0_i32_1 = arith.constant 0 : i32
    return %c0_i32, %c0_i32_0 : i32, i32
  }
  func.func @transform_4(%arg0: i32) -> (i32, i32) {
    %c0_i32 = arith.constant 0 : i32
    %c0_i32_0 = arith.constant 0 : i32
    %c0_i32_1 = arith.constant 0 : i32
    return %c0_i32, %c0_i32_0 : i32, i32
  }
  func.func @transform_5(%arg0: i32) -> (i32, i32) {
    %c0_i32 = arith.constant 0 : i32
    %c0_i32_0 = arith.constant 0 : i32
    return %arg0, %c0_i32 : i32, i32
  }
}

module attributes {stable_mosaic.version = 11 : i64} {
  func.func @_conv2_kernel(%arg0: i32, %arg1: memref<1x110x128xbf16, #tpu.memory_space<vmem>>, %arg2: memref<9x128x128xbf16, #tpu.memory_space<vmem>>, %arg3: memref<1x128xf32, #tpu.memory_space<vmem>>, %arg4: memref<1x80x128xf32, #tpu.memory_space<vmem>>) attributes {dimension_semantics = [#tpu.dimension_semantics<parallel>], iteration_bounds = array<i64: 2>, scalar_prefetch = 0 : i64, scratch_operands = 0 : i64, tpu.core_type = #tpu.core_type<tc>, window_params = [{transform_indices = @transform_0, window_bounds = array<i64: 1, 110, 128>}, {pipeline_mode = #tpu.pipeline_mode<synchronous>, transform_indices = @transform_1, window_bounds = array<i64: 9, 128, 128>}, {pipeline_mode = #tpu.pipeline_mode<synchronous>, transform_indices = @transform_2, window_bounds = array<i64: 1, 128>}, {transform_indices = @transform_3, window_bounds = array<i64: 1, 80, 128>}]} {
    %cst = arith.constant 0.000000e+00 : f32
    %0 = vector.broadcast %cst : f32 to vector<80x128xf32>
    %c0 = arith.constant 0 : index
    %c0_0 = arith.constant 0 : index
    %c0_1 = arith.constant 0 : index
    %1 = vector.load %arg1[%c0, %c0_0, %c0_1] : memref<1x110x128xbf16, #tpu.memory_space<vmem>>, vector<1x80x128xbf16>
    %2 = vector.shape_cast %1 : vector<1x80x128xbf16> to vector<80x128xbf16>
    %c0_2 = arith.constant 0 : index
    %c0_3 = arith.constant 0 : index
    %c0_4 = arith.constant 0 : index
    %3 = vector.load %arg2[%c0_2, %c0_3, %c0_4] : memref<9x128x128xbf16, #tpu.memory_space<vmem>>, vector<1x128x128xbf16>
    %4 = vector.shape_cast %3 : vector<1x128x128xbf16> to vector<128x128xbf16>
    %cst_5 = arith.constant dense<0.000000e+00> : vector<80x128xf32>
    %5 = tpu.matmul %2, %4, %cst_5 {dimension_numbers = #tpu.dot_dimension_numbers<[1], [0], [0], [1], [0, 0, 1, 1], [], []>} : vector<80x128xbf16>, vector<128x128xbf16>, vector<80x128xf32> -> vector<80x128xf32>
    %6 = arith.addf %0, %5 : vector<80x128xf32>
    %c0_6 = arith.constant 0 : index
    %c1 = arith.constant 1 : index
    %c0_7 = arith.constant 0 : index
    %7 = vector.load %arg1[%c0_6, %c1, %c0_7] : memref<1x110x128xbf16, #tpu.memory_space<vmem>>, vector<1x80x128xbf16>
    %8 = vector.shape_cast %7 : vector<1x80x128xbf16> to vector<80x128xbf16>
    %c1_8 = arith.constant 1 : index
    %c0_9 = arith.constant 0 : index
    %c0_10 = arith.constant 0 : index
    %9 = vector.load %arg2[%c1_8, %c0_9, %c0_10] : memref<9x128x128xbf16, #tpu.memory_space<vmem>>, vector<1x128x128xbf16>
    %10 = vector.shape_cast %9 : vector<1x128x128xbf16> to vector<128x128xbf16>
    %cst_11 = arith.constant dense<0.000000e+00> : vector<80x128xf32>
    %11 = tpu.matmul %8, %10, %cst_11 {dimension_numbers = #tpu.dot_dimension_numbers<[1], [0], [0], [1], [0, 0, 1, 1], [], []>} : vector<80x128xbf16>, vector<128x128xbf16>, vector<80x128xf32> -> vector<80x128xf32>
    %12 = arith.addf %6, %11 : vector<80x128xf32>
    %c0_12 = arith.constant 0 : index
    %c2 = arith.constant 2 : index
    %c0_13 = arith.constant 0 : index
    %13 = vector.load %arg1[%c0_12, %c2, %c0_13] : memref<1x110x128xbf16, #tpu.memory_space<vmem>>, vector<1x80x128xbf16>
    %14 = vector.shape_cast %13 : vector<1x80x128xbf16> to vector<80x128xbf16>
    %c2_14 = arith.constant 2 : index
    %c0_15 = arith.constant 0 : index
    %c0_16 = arith.constant 0 : index
    %15 = vector.load %arg2[%c2_14, %c0_15, %c0_16] : memref<9x128x128xbf16, #tpu.memory_space<vmem>>, vector<1x128x128xbf16>
    %16 = vector.shape_cast %15 : vector<1x128x128xbf16> to vector<128x128xbf16>
    %cst_17 = arith.constant dense<0.000000e+00> : vector<80x128xf32>
    %17 = tpu.matmul %14, %16, %cst_17 {dimension_numbers = #tpu.dot_dimension_numbers<[1], [0], [0], [1], [0, 0, 1, 1], [], []>} : vector<80x128xbf16>, vector<128x128xbf16>, vector<80x128xf32> -> vector<80x128xf32>
    %18 = arith.addf %12, %17 : vector<80x128xf32>
    %c0_18 = arith.constant 0 : index
    %c10 = arith.constant 10 : index
    %c0_19 = arith.constant 0 : index
    %19 = vector.load %arg1[%c0_18, %c10, %c0_19] : memref<1x110x128xbf16, #tpu.memory_space<vmem>>, vector<1x80x128xbf16>
    %20 = vector.shape_cast %19 : vector<1x80x128xbf16> to vector<80x128xbf16>
    %c3 = arith.constant 3 : index
    %c0_20 = arith.constant 0 : index
    %c0_21 = arith.constant 0 : index
    %21 = vector.load %arg2[%c3, %c0_20, %c0_21] : memref<9x128x128xbf16, #tpu.memory_space<vmem>>, vector<1x128x128xbf16>
    %22 = vector.shape_cast %21 : vector<1x128x128xbf16> to vector<128x128xbf16>
    %cst_22 = arith.constant dense<0.000000e+00> : vector<80x128xf32>
    %23 = tpu.matmul %20, %22, %cst_22 {dimension_numbers = #tpu.dot_dimension_numbers<[1], [0], [0], [1], [0, 0, 1, 1], [], []>} : vector<80x128xbf16>, vector<128x128xbf16>, vector<80x128xf32> -> vector<80x128xf32>
    %24 = arith.addf %18, %23 : vector<80x128xf32>
    %c0_23 = arith.constant 0 : index
    %c11 = arith.constant 11 : index
    %c0_24 = arith.constant 0 : index
    %25 = vector.load %arg1[%c0_23, %c11, %c0_24] : memref<1x110x128xbf16, #tpu.memory_space<vmem>>, vector<1x80x128xbf16>
    %26 = vector.shape_cast %25 : vector<1x80x128xbf16> to vector<80x128xbf16>
    %c4 = arith.constant 4 : index
    %c0_25 = arith.constant 0 : index
    %c0_26 = arith.constant 0 : index
    %27 = vector.load %arg2[%c4, %c0_25, %c0_26] : memref<9x128x128xbf16, #tpu.memory_space<vmem>>, vector<1x128x128xbf16>
    %28 = vector.shape_cast %27 : vector<1x128x128xbf16> to vector<128x128xbf16>
    %cst_27 = arith.constant dense<0.000000e+00> : vector<80x128xf32>
    %29 = tpu.matmul %26, %28, %cst_27 {dimension_numbers = #tpu.dot_dimension_numbers<[1], [0], [0], [1], [0, 0, 1, 1], [], []>} : vector<80x128xbf16>, vector<128x128xbf16>, vector<80x128xf32> -> vector<80x128xf32>
    %30 = arith.addf %24, %29 : vector<80x128xf32>
    %c0_28 = arith.constant 0 : index
    %c12 = arith.constant 12 : index
    %c0_29 = arith.constant 0 : index
    %31 = vector.load %arg1[%c0_28, %c12, %c0_29] : memref<1x110x128xbf16, #tpu.memory_space<vmem>>, vector<1x80x128xbf16>
    %32 = vector.shape_cast %31 : vector<1x80x128xbf16> to vector<80x128xbf16>
    %c5 = arith.constant 5 : index
    %c0_30 = arith.constant 0 : index
    %c0_31 = arith.constant 0 : index
    %33 = vector.load %arg2[%c5, %c0_30, %c0_31] : memref<9x128x128xbf16, #tpu.memory_space<vmem>>, vector<1x128x128xbf16>
    %34 = vector.shape_cast %33 : vector<1x128x128xbf16> to vector<128x128xbf16>
    %cst_32 = arith.constant dense<0.000000e+00> : vector<80x128xf32>
    %35 = tpu.matmul %32, %34, %cst_32 {dimension_numbers = #tpu.dot_dimension_numbers<[1], [0], [0], [1], [0, 0, 1, 1], [], []>} : vector<80x128xbf16>, vector<128x128xbf16>, vector<80x128xf32> -> vector<80x128xf32>
    %36 = arith.addf %30, %35 : vector<80x128xf32>
    %c0_33 = arith.constant 0 : index
    %c20 = arith.constant 20 : index
    %c0_34 = arith.constant 0 : index
    %37 = vector.load %arg1[%c0_33, %c20, %c0_34] : memref<1x110x128xbf16, #tpu.memory_space<vmem>>, vector<1x80x128xbf16>
    %38 = vector.shape_cast %37 : vector<1x80x128xbf16> to vector<80x128xbf16>
    %c6 = arith.constant 6 : index
    %c0_35 = arith.constant 0 : index
    %c0_36 = arith.constant 0 : index
    %39 = vector.load %arg2[%c6, %c0_35, %c0_36] : memref<9x128x128xbf16, #tpu.memory_space<vmem>>, vector<1x128x128xbf16>
    %40 = vector.shape_cast %39 : vector<1x128x128xbf16> to vector<128x128xbf16>
    %cst_37 = arith.constant dense<0.000000e+00> : vector<80x128xf32>
    %41 = tpu.matmul %38, %40, %cst_37 {dimension_numbers = #tpu.dot_dimension_numbers<[1], [0], [0], [1], [0, 0, 1, 1], [], []>} : vector<80x128xbf16>, vector<128x128xbf16>, vector<80x128xf32> -> vector<80x128xf32>
    %42 = arith.addf %36, %41 : vector<80x128xf32>
    %c0_38 = arith.constant 0 : index
    %c21 = arith.constant 21 : index
    %c0_39 = arith.constant 0 : index
    %43 = vector.load %arg1[%c0_38, %c21, %c0_39] : memref<1x110x128xbf16, #tpu.memory_space<vmem>>, vector<1x80x128xbf16>
    %44 = vector.shape_cast %43 : vector<1x80x128xbf16> to vector<80x128xbf16>
    %c7 = arith.constant 7 : index
    %c0_40 = arith.constant 0 : index
    %c0_41 = arith.constant 0 : index
    %45 = vector.load %arg2[%c7, %c0_40, %c0_41] : memref<9x128x128xbf16, #tpu.memory_space<vmem>>, vector<1x128x128xbf16>
    %46 = vector.shape_cast %45 : vector<1x128x128xbf16> to vector<128x128xbf16>
    %cst_42 = arith.constant dense<0.000000e+00> : vector<80x128xf32>
    %47 = tpu.matmul %44, %46, %cst_42 {dimension_numbers = #tpu.dot_dimension_numbers<[1], [0], [0], [1], [0, 0, 1, 1], [], []>} : vector<80x128xbf16>, vector<128x128xbf16>, vector<80x128xf32> -> vector<80x128xf32>
    %48 = arith.addf %42, %47 : vector<80x128xf32>
    %c0_43 = arith.constant 0 : index
    %c22 = arith.constant 22 : index
    %c0_44 = arith.constant 0 : index
    %49 = vector.load %arg1[%c0_43, %c22, %c0_44] : memref<1x110x128xbf16, #tpu.memory_space<vmem>>, vector<1x80x128xbf16>
    %50 = vector.shape_cast %49 : vector<1x80x128xbf16> to vector<80x128xbf16>
    %c8 = arith.constant 8 : index
    %c0_45 = arith.constant 0 : index
    %c0_46 = arith.constant 0 : index
    %51 = vector.load %arg2[%c8, %c0_45, %c0_46] : memref<9x128x128xbf16, #tpu.memory_space<vmem>>, vector<1x128x128xbf16>
    %52 = vector.shape_cast %51 : vector<1x128x128xbf16> to vector<128x128xbf16>
    %cst_47 = arith.constant dense<0.000000e+00> : vector<80x128xf32>
    %53 = tpu.matmul %50, %52, %cst_47 {dimension_numbers = #tpu.dot_dimension_numbers<[1], [0], [0], [1], [0, 0, 1, 1], [], []>} : vector<80x128xbf16>, vector<128x128xbf16>, vector<80x128xf32> -> vector<80x128xf32>
    %54 = arith.addf %48, %53 : vector<80x128xf32>
    %c0_48 = arith.constant 0 : index
    %c0_49 = arith.constant 0 : index
    %55 = vector.load %arg3[%c0_48, %c0_49] : memref<1x128xf32, #tpu.memory_space<vmem>>, vector<1x128xf32>
    %56 = vector.broadcast %55 : vector<1x128xf32> to vector<80x128xf32>
    %57 = arith.addf %54, %56 : vector<80x128xf32>
    %c0_50 = arith.constant 0 : index
    %c0_51 = arith.constant 0 : index
    %c0_52 = arith.constant 0 : index
    %58 = vector.load %arg4[%c0_50, %c0_51, %c0_52] : memref<1x80x128xf32, #tpu.memory_space<vmem>>, vector<1x80x128xf32>
    %59 = vector.shape_cast %58 : vector<1x80x128xf32> to vector<80x128xf32>
    %60 = vector.shape_cast %57 : vector<80x128xf32> to vector<1x80x128xf32>
    tpu.vector_store %arg4[%c0_50, %c0_51, %c0_52], %60 {strides = array<i32>} : memref<1x80x128xf32, #tpu.memory_space<vmem>>, vector<1x80x128xf32>,
    return
  }
  func.func @transform_0(%arg0: i32) -> (i32, i32, i32) {
    %c0_i32 = arith.constant 0 : i32
    %c0_i32_0 = arith.constant 0 : i32
    %c0_i32_1 = arith.constant 0 : i32
    return %arg0, %c0_i32, %c0_i32_0 : i32, i32, i32
  }
  func.func @transform_1(%arg0: i32) -> (i32, i32, i32) {
    %c0_i32 = arith.constant 0 : i32
    %c0_i32_0 = arith.constant 0 : i32
    %c0_i32_1 = arith.constant 0 : i32
    %c0_i32_2 = arith.constant 0 : i32
    return %c0_i32, %c0_i32_0, %c0_i32_1 : i32, i32, i32
  }
  func.func @transform_2(%arg0: i32) -> (i32, i32) {
    %c0_i32 = arith.constant 0 : i32
    %c0_i32_0 = arith.constant 0 : i32
    %c0_i32_1 = arith.constant 0 : i32
    return %c0_i32, %c0_i32_0 : i32, i32
  }
  func.func @transform_3(%arg0: i32) -> (i32, i32, i32) {
    %c0_i32 = arith.constant 0 : i32
    %c0_i32_0 = arith.constant 0 : i32
    %c0_i32_1 = arith.constant 0 : i32
    return %arg0, %c0_i32, %c0_i32_0 : i32, i32, i32
  }
}

</mosaic_0001>

<llo_original>
// kernel: stem_forward.2
$region0: #{stem_forward.2}
  #allocation0 [shape = 'u32[]', space=smem, size = 0x4, offset = 0x4, fixed_abs, tag = 'smem constant byte address 0x4 - core index']
  #allocation1 [shape = 'u32[144,128]{1,0:T(1,128)}', space=vmem, size = 0x12000, scoped, tag = 'internal scratch']
  %s0 = inlined_call_operand.vmem [shape: bf16[128,36], index: 0, kind: input, shape index: {}]
  %s1 = inlined_call_operand.vmem [shape: bf16[36,128], index: 1, kind: input, shape index: {}]
  %s2 = inlined_call_operand.vmem [shape: f32[1,128], index: 2, kind: input, shape index: {}]
  %s3 = inlined_call_operand.vmem [shape: f32[1,128], index: 3, kind: input, shape index: {}]
  %s4 = inlined_call_operand.vmem [shape: f32[1,128], index: 4, kind: input, shape index: {}]
  %s5 = inlined_call_operand.vmem [shape: bf16[128,128], index: 5, kind: output, shape index: {}]
  %s6 = sld [smem:[#allocation0]]
  $region30: #{stem_forward.2} parent=0
    _
  %s8 = ssub.s32 1, %s6
  %s9 = scalar_select 0, %s8, %s6
  // Predicated region
  $region2: #{stem_forward.2} parent=0 // pred_check
    _
  $region3: #{stem_forward.2} parent=0 // pred_check_branch
    %11 = sbr.rel (0) target = $region5
  $region4: #{stem_forward.2} parent=0 // pred_region
    _
  $region5: #{stem_forward.2} parent=0 // pred_fallthru
    _
  // Predicated region
  $region6: #{stem_forward.2} parent=0 // pred_check
    _
  $region7: #{stem_forward.2} parent=0 // pred_check_branch
    %13 = sbr.rel (0) target = $region9
  $region8: #{stem_forward.2} parent=0 // pred_region
    _
  $region9: #{stem_forward.2} parent=0 // pred_fallthru
    _
  // Predicated region
  $region10: #{stem_forward.2} parent=0 // pred_check
    _
  $region11: #{stem_forward.2} parent=0 // pred_check_branch
    %15 = sbr.rel (0) target = $region13
  $region12: #{stem_forward.2} parent=0 // pred_region
    _
  $region13: #{stem_forward.2} parent=0 // pred_fallthru
    _
  // Predicated region
  $region14: #{stem_forward.2} parent=0 // pred_check
    _
  $region15: #{stem_forward.2} parent=0 // pred_check_branch
    %17 = sbr.rel (0) target = $region17
  $region16: #{stem_forward.2} parent=0 // pred_region
    _
  $region17: #{stem_forward.2} parent=0 // pred_fallthru
    _
  // Predicated region
  $region18: #{stem_forward.2} parent=0 // pred_check
    _
  $region19: #{stem_forward.2} parent=0 // pred_check_branch
    %19 = sbr.rel (0) target = $region21
  $region20: #{stem_forward.2} parent=0 // pred_region
    _
  $region21: #{stem_forward.2} parent=0 // pred_fallthru
    _
  %v21 = vld [vmem:[%s0] sm:$0xf]
  %v22 = vld [vmem:[%s0 + $0x4] sm:$0xf]
  %v23 = vld [vmem:[%s0 + $0x8] sm:$0xf]
  %v24 = vld [vmem:[%s0 + $0xc] sm:$0xf]
  %v25 = vld [vmem:[%s0 + $0x10] sm:$0xf]
  %v26 = vld [vmem:[%s0 + $0x14] sm:$0xf]
  %v27 = vld [vmem:[%s0 + $0x18] sm:$0xf]
  %v28 = vld [vmem:[%s0 + $0x1c] sm:$0xf]
  %v29 = vld [vmem:[%s0 + $0x20] sm:$0xf]
  %v30 = vld [vmem:[%s0 + $0x24] sm:$0xf]
  %v31 = vld [vmem:[%s0 + $0x28] sm:$0xf]
  %v32 = vld [vmem:[%s0 + $0x2c] sm:$0xf]
  %v33 = vld [vmem:[%s0 + $0x30] sm:$0xf]
  %v34 = vld [vmem:[%s0 + $0x34] sm:$0xf]
  %v35 = vld [vmem:[%s0 + $0x38] sm:$0xf]
  %v36 = vld [vmem:[%s0 + $0x3c] sm:$0xf]
  %v37 = vld [vmem:[%s1] sm:$0xf]
  %v38 = vld [vmem:[%s1 + $0x4] sm:$0xf]
  %v39 = vld [vmem:[%s1 + $0x8] sm:$0xf]
  %v40 = vld [vmem:[%s1 + $0xc] sm:$0xf]
  %v41 = vld [vmem:[%s1 + $0x10] sm:$0x3]
  %v42 = vld [vmem:[%s2] sm:$0x1]
  %v44 = vlaneseq
  %v45 = vshrl.u32 %v44, 7
  %v46 = vsub.s32 0, %v45
  %v47 = vrot.slane %v42, %v46
  %v65 = vunpack.c.l.b16 %v21
  %v66 = vunpack.c.l.b16 %v22
  %v67 = vunpack.c.l.b16 %v23
  %v68 = vunpack.c.l.b16 %v24
  %v69 = vunpack.c.l.b16 %v25
  %v70 = vunpack.c.l.b16 %v26
  %v71 = vunpack.c.l.b16 %v27
  %v72 = vunpack.c.l.b16 %v28
  %v73 = vunpack.c.l.b16 %v29
  %v74 = vunpack.c.l.b16 %v30
  %v75 = vunpack.c.l.b16 %v31
  %v76 = vunpack.c.l.b16 %v32
  %v77 = vunpack.c.l.b16 %v33
  %v78 = vunpack.c.l.b16 %v34
  %v79 = vunpack.c.l.b16 %v35
  %v80 = vunpack.c.l.b16 %v36
  %v81 = vpack.c.b16 %v66, %v65
  %v82 = vpack.c.b16 %v68, %v67
  %v83 = vpack.c.b16 %v70, %v69
  %v84 = vpack.c.b16 %v72, %v71
  %v85 = vpack.c.b16 %v74, %v73
  %v86 = vpack.c.b16 %v76, %v75
  %v87 = vpack.c.b16 %v78, %v77
  %v88 = vpack.c.b16 %v80, %v79
  %v94 = vunpack.c.l.b16 %v37
  %v95 = vunpack.c.l.b16 %v38
  %v96 = vunpack.c.l.b16 %v39
  %v97 = vunpack.c.l.b16 %v40
  %v98 = vunpack.c.l.b16 %v41
  %v99 = vpack.c.b16 %v95, %v94
  %v100 = vpack.c.b16 %v97, %v96
  %v101 = vpack.c.b16 %v98, %v98
  %vm104 = vcmask 293888
  %v106 = vsel %vm104, %v81, 0
  %v109 = vsel %vm104, %v82, 0
  %v112 = vsel %vm104, %v83, 0
  %v115 = vsel %vm104, %v84, 0
  %v118 = vsel %vm104, %v85, 0
  %v121 = vsel %vm104, %v86, 0
  %v124 = vsel %vm104, %v87, 0
  %v127 = vsel %vm104, %v88, 0
  %vm129 = vcmask 1041408
  %v131 = vsel %vm129, %v101, 0
  %133 = vmatprep.subr.bf16.mxu0 0
  %134 = vmatpush1.bf16.msra.mxu0 0
  %135 = vmatprep.subr.bf16.mxu0 0
  %136 = vmatpush1.bf16.msra.mxu0 0
  %137 = vmatprep.subr.bf16.mxu0 0
  %138 = vmatpush1.bf16.msra.mxu0 0
  %139 = vmatprep.subr.bf16.mxu0 0
  %140 = vmatpush1.bf16.msra.mxu0 0
  %141 = vmatprep.subr.bf16.mxu0 0
  %142 = vmatpush1.bf16.msra.mxu0 0
  %143 = vmatprep.subr.bf16.mxu0 0
  %144 = vmatpush1.bf16.msra.mxu0 %v131
  %145 = vmatprep.subr.bf16.mxu0 0
  %146 = vmatpush1.bf16.msra.mxu0 %v100
  %147 = vmatprep.subr.bf16.mxu0 0
  %148 = vmatpush1.bf16.msra.mxu0 %v99
  %149 = vmatprep.subr.bf16.mxu0 0
  %150 = vmatpush2.bf16.msra.mxu0 0
  %151 = vmatprep.subr.bf16.mxu0 0
  %152 = vmatpush2.bf16.msra.mxu0 0
  %153 = vmatprep.subr.bf16.mxu0 0
  %154 = vmatpush2.bf16.msra.mxu0 0
  %155 = vmatprep.subr.bf16.mxu0 0
  %156 = vmatpush2.bf16.msra.mxu0 0
  %157 = vmatprep.subr.bf16.mxu0 0
  %158 = vmatpush2.bf16.msra.mxu0 0
  %159 = vmatprep.subr.bf16.mxu0 0
  %160 = vmatpush2.bf16.msra.mxu0 0
  %161 = vmatprep.subr.bf16.mxu0 0
  %162 = vmatpush2.bf16.msra.mxu0 0
  %163 = vmatprep.subr.bf16.mxu0 0
  %164 = vmatpush2.bf16.msra.mxu0 0
  %165 = vmatprep.mubr.bf16.mxu0 0
  %166 = vmatmul.mubr.bf16.gmra.mxu0 %v106
  %v167 = vpop.f32.mrf.mxu0
  %v168 = vadd.f32 %v47, %v167
  %v169 = vpop.f32.mrf.mxu0
  %v170 = vpop.f32.mrf.mxu0
  %v171 = vadd.f32 %v47, %v170
  %v172 = vpop.f32.mrf.mxu0
  %173 = vmatprep.mubr.bf16.mxu0 0
  %174 = vmatmul.mubr.bf16.gmra.mxu0 %v109
  %v175 = vpop.f32.mrf.mxu0
  %v176 = vadd.f32 %v47, %v175
  %v177 = vpop.f32.mrf.mxu0
  %v178 = vpop.f32.mrf.mxu0
  %v179 = vadd.f32 %v47, %v178
  %v180 = vpop.f32.mrf.mxu0
  %181 = vmatprep.mubr.bf16.mxu0 0
  %182 = vmatmul.mubr.bf16.gmra.mxu0 %v112
  %v183 = vpop.f32.mrf.mxu0
  %v184 = vadd.f32 %v47, %v183
  %v185 = vpop.f32.mrf.mxu0
  %v186 = vpop.f32.mrf.mxu0
  %v187 = vadd.f32 %v47, %v186
  %v188 = vpop.f32.mrf.mxu0
  %189 = vmatprep.mubr.bf16.mxu0 0
  %190 = vmatmul.mubr.bf16.gmra.mxu0 %v115
  %v191 = vpop.f32.mrf.mxu0
  %v192 = vadd.f32 %v47, %v191
  %v193 = vpop.f32.mrf.mxu0
  %v194 = vpop.f32.mrf.mxu0
  %v195 = vadd.f32 %v47, %v194
  %v196 = vpop.f32.mrf.mxu0
  %197 = vmatprep.mubr.bf16.mxu0 0
  %198 = vmatmul.mubr.bf16.gmra.mxu0 %v118
  %v199 = vpop.f32.mrf.mxu0
  %v200 = vadd.f32 %v47, %v199
  %v201 = vpop.f32.mrf.mxu0
  %v202 = vpop.f32.mrf.mxu0
  %v203 = vadd.f32 %v47, %v202
  %v204 = vpop.f32.mrf.mxu0
  %205 = vmatprep.mubr.bf16.mxu0 0
  %206 = vmatmul.mubr.bf16.gmra.mxu0 %v121
  %v207 = vpop.f32.mrf.mxu0
  %v208 = vadd.f32 %v47, %v207
  %v209 = vpop.f32.mrf.mxu0
  %v210 = vpop.f32.mrf.mxu0
  %v211 = vadd.f32 %v47, %v210
  %v212 = vpop.f32.mrf.mxu0
  %213 = vmatprep.mubr.bf16.mxu0 0
  %214 = vmatmul.mubr.bf16.gmra.mxu0 %v124
  %v215 = vpop.f32.mrf.mxu0
  %v216 = vadd.f32 %v47, %v215
  %v217 = vpop.f32.mrf.mxu0
  %v218 = vpop.f32.mrf.mxu0
  %v219 = vadd.f32 %v47, %v218
  %v220 = vpop.f32.mrf.mxu0
  %221 = vmatprep.mubr.bf16.mxu0 0
  %222 = vmatmul.mubr.bf16.gmra.mxu0 %v127
  %v223 = vpop.f32.mrf.mxu0
  %v224 = vadd.f32 %v47, %v223
  %v225 = vpop.f32.mrf.mxu0
  %v226 = vpop.f32.mrf.mxu0
  %v227 = vadd.f32 %v47, %v226
  %v228 = vpop.f32.mrf.mxu0
  %229 = vdwg.mxu0
  %230 = vadd.xlane.f32.xlu0 %v168
  %v231 = vpop.xlane.xlu0 %230
  %232 = vadd.xlane.f32.xlu0 %v171
  %v233 = vpop.xlane.xlu0 %232
  %234 = vadd.xlane.f32.xlu0 %v176
  %v235 = vpop.xlane.xlu0 %234
  %236 = vadd.xlane.f32.xlu0 %v179
  %v237 = vpop.xlane.xlu0 %236
  %238 = vadd.xlane.f32.xlu0 %v184
  %v239 = vpop.xlane.xlu0 %238
  %240 = vadd.xlane.f32.xlu0 %v187
  %v241 = vpop.xlane.xlu0 %240
  %242 = vadd.xlane.f32.xlu0 %v192
  %v243 = vpop.xlane.xlu0 %242
  %244 = vadd.xlane.f32.xlu0 %v195
  %v245 = vpop.xlane.xlu0 %244
  %246 = vadd.xlane.f32.xlu0 %v200
  %v247 = vpop.xlane.xlu0 %246
  %248 = vadd.xlane.f32.xlu0 %v203
  %v249 = vpop.xlane.xlu0 %248
  %250 = vadd.xlane.f32.xlu0 %v208
  %v251 = vpop.xlane.xlu0 %250
  %252 = vadd.xlane.f32.xlu0 %v211
  %v253 = vpop.xlane.xlu0 %252
  %254 = vadd.xlane.f32.xlu0 %v216
  %v255 = vpop.xlane.xlu0 %254
  %256 = vadd.xlane.f32.xlu0 %v219
  %v257 = vpop.xlane.xlu0 %256
  %258 = vadd.xlane.f32.xlu0 %v224
  %v259 = vpop.xlane.xlu0 %258
  %260 = vadd.xlane.f32.xlu0 %v227
  %v261 = vpop.xlane.xlu0 %260
  %v262 = vmul.f32 %v231, 0.03125
  %v263 = vmul.f32 %v233, 0.03125
  %v264 = vmul.f32 %v235, 0.03125
  %v265 = vmul.f32 %v237, 0.03125
  %v266 = vmul.f32 %v239, 0.03125
  %v267 = vmul.f32 %v241, 0.03125
  %v268 = vmul.f32 %v243, 0.03125
  %v269 = vmul.f32 %v245, 0.03125
  %v270 = vmul.f32 %v247, 0.03125
  %v271 = vmul.f32 %v249, 0.03125
  %v272 = vmul.f32 %v251, 0.03125
  %v273 = vmul.f32 %v253, 0.03125
  %v274 = vmul.f32 %v255, 0.03125
  %v275 = vmul.f32 %v257, 0.03125
  %v276 = vmul.f32 %v259, 0.03125
  %v277 = vmul.f32 %v261, 0.03125
  %v278 = vmul.f32 %v168, %v168
  %v279 = vmul.f32 %v171, %v171
  %v280 = vmul.f32 %v176, %v176
  %v281 = vmul.f32 %v179, %v179
  %v282 = vmul.f32 %v184, %v184
  %v283 = vmul.f32 %v187, %v187
  %v284 = vmul.f32 %v192, %v192
  %v285 = vmul.f32 %v195, %v195
  %v286 = vmul.f32 %v200, %v200
  %v287 = vmul.f32 %v203, %v203
  %v288 = vmul.f32 %v208, %v208
  %v289 = vmul.f32 %v211, %v211
  %v290 = vmul.f32 %v216, %v216
  %v291 = vmul.f32 %v219, %v219
  %v292 = vmul.f32 %v224, %v224
  %v293 = vmul.f32 %v227, %v227
  %294 = vadd.xlane.f32.xlu0 %v278
  %v295 = vpop.xlane.xlu0 %294
  %296 = vadd.xlane.f32.xlu0 %v279
  %v297 = vpop.xlane.xlu0 %296
  %298 = vadd.xlane.f32.xlu0 %v280
  %v299 = vpop.xlane.xlu0 %298
  %300 = vadd.xlane.f32.xlu0 %v281
  %v301 = vpop.xlane.xlu0 %300
  %302 = vadd.xlane.f32.xlu0 %v282
  %v303 = vpop.xlane.xlu0 %302
  %304 = vadd.xlane.f32.xlu0 %v283
  %v305 = vpop.xlane.xlu0 %304
  %306 = vadd.xlane.f32.xlu0 %v284
  %v307 = vpop.xlane.xlu0 %306
  %308 = vadd.xlane.f32.xlu0 %v285
  %v309 = vpop.xlane.xlu0 %308
  %310 = vadd.xlane.f32.xlu0 %v286
  %v311 = vpop.xlane.xlu0 %310
  %312 = vadd.xlane.f32.xlu0 %v287
  %v313 = vpop.xlane.xlu0 %312
  %314 = vadd.xlane.f32.xlu0 %v288
  %v315 = vpop.xlane.xlu0 %314
  %316 = vadd.xlane.f32.xlu0 %v289
  %v317 = vpop.xlane.xlu0 %316
  %318 = vadd.xlane.f32.xlu0 %v290
  %v319 = vpop.xlane.xlu0 %318
  %320 = vadd.xlane.f32.xlu0 %v291
  %v321 = vpop.xlane.xlu0 %320
  %322 = vadd.xlane.f32.xlu0 %v292
  %v323 = vpop.xlane.xlu0 %322
  %324 = vadd.xlane.f32.xlu0 %v293
  %v325 = vpop.xlane.xlu0 %324
  %v326 = vmul.f32 %v295, 0.03125
  %v327 = vmul.f32 %v297, 0.03125
  %v328 = vmul.f32 %v299, 0.03125
  %v329 = vmul.f32 %v301, 0.03125
  %v330 = vmul.f32 %v303, 0.03125
  %v331 = vmul.f32 %v305, 0.03125
  %v332 = vmul.f32 %v307, 0.03125
  %v333 = vmul.f32 %v309, 0.03125
  %v334 = vmul.f32 %v311, 0.03125
  %v335 = vmul.f32 %v313, 0.03125
  %v336 = vmul.f32 %v315, 0.03125
  %v337 = vmul.f32 %v317, 0.03125
  %v338 = vmul.f32 %v319, 0.03125
  %v339 = vmul.f32 %v321, 0.03125
  %v340 = vmul.f32 %v323, 0.03125
  %v341 = vmul.f32 %v325, 0.03125
  %v342 = vmul.f32 %v262, %v262
  %v343 = vmul.f32 %v263, %v263
  %v344 = vmul.f32 %v264, %v264
  %v345 = vmul.f32 %v265, %v265
  %v346 = vmul.f32 %v266, %v266
  %v347 = vmul.f32 %v267, %v267
  %v348 = vmul.f32 %v268, %v268
  %v349 = vmul.f32 %v269, %v269
  %v350 = vmul.f32 %v270, %v270
  %v351 = vmul.f32 %v271, %v271
  %v352 = vmul.f32 %v272, %v272
  %v353 = vmul.f32 %v273, %v273
  %v354 = vmul.f32 %v274, %v274
  %v355 = vmul.f32 %v275, %v275
  %v356 = vmul.f32 %v276, %v276
  %v357 = vmul.f32 %v277, %v277
  %v358 = vsub.f32 %v326, %v342
  %v359 = vsub.f32 %v327, %v343
  %v360 = vsub.f32 %v328, %v344
  %v361 = vsub.f32 %v329, %v345
  %v362 = vsub.f32 %v330, %v346
  %v363 = vsub.f32 %v331, %v347
  %v364 = vsub.f32 %v332, %v348
  %v365 = vsub.f32 %v333, %v349
  %v366 = vsub.f32 %v334, %v350
  %v367 = vsub.f32 %v335, %v351
  %v368 = vsub.f32 %v336, %v352
  %v369 = vsub.f32 %v337, %v353
  %v370 = vsub.f32 %v338, %v354
  %v371 = vsub.f32 %v339, %v355
  %v372 = vsub.f32 %v340, %v356
  %v373 = vsub.f32 %v341, %v357
  %v374 = vmax.f32 %v358, 0.0
  %v375 = vmax.f32 %v359, 0.0
  %v376 = vmax.f32 %v360, 0.0
  %v377 = vmax.f32 %v361, 0.0
  %v378 = vmax.f32 %v362, 0.0
  %v379 = vmax.f32 %v363, 0.0
  %v380 = vmax.f32 %v364, 0.0
  %v381 = vmax.f32 %v365, 0.0
  %v382 = vmax.f32 %v366, 0.0
  %v383 = vmax.f32 %v367, 0.0
  %v384 = vmax.f32 %v368, 0.0
  %v385 = vmax.f32 %v369, 0.0
  %v386 = vmax.f32 %v370, 0.0
  %v387 = vmax.f32 %v371, 0.0
  %v388 = vmax.f32 %v372, 0.0
  %v389 = vmax.f32 %v373, 0.0
  %v390 = vsub.f32 %v168, %v262
  %v391 = vsub.f32 %v171, %v263
  %v392 = vsub.f32 %v176, %v264
  %v393 = vsub.f32 %v179, %v265
  %v394 = vsub.f32 %v184, %v266
  %v395 = vsub.f32 %v187, %v267
  %v396 = vsub.f32 %v192, %v268
  %v397 = vsub.f32 %v195, %v269
  %v398 = vsub.f32 %v200, %v270
  %v399 = vsub.f32 %v203, %v271
  %v400 = vsub.f32 %v208, %v272
  %v401 = vsub.f32 %v211, %v273
  %v402 = vsub.f32 %v216, %v274
  %v403 = vsub.f32 %v219, %v275
  %v404 = vsub.f32 %v224, %v276
  %v405 = vsub.f32 %v227, %v277
  %v406 = vadd.f32 %v374, 1e-06
  %v407 = vadd.f32 %v375, 1e-06
  %v408 = vadd.f32 %v376, 1e-06
  %v409 = vadd.f32 %v377, 1e-06
  %v410 = vadd.f32 %v378, 1e-06
  %v411 = vadd.f32 %v379, 1e-06
  %v412 = vadd.f32 %v380, 1e-06
  %v413 = vadd.f32 %v381, 1e-06
  %v414 = vadd.f32 %v382, 1e-06
  %v415 = vadd.f32 %v383, 1e-06
  %v416 = vadd.f32 %v384, 1e-06
  %v417 = vadd.f32 %v385, 1e-06
  %v418 = vadd.f32 %v386, 1e-06
  %v419 = vadd.f32 %v387, 1e-06
  %v420 = vadd.f32 %v388, 1e-06
  %v421 = vadd.f32 %v389, 1e-06
  %v422 = vrsqrt.pop %v406
  %v423 = vrsqrt.pop %v407
  %v424 = vrsqrt.pop %v408
  %v425 = vrsqrt.pop %v409
  %v426 = vrsqrt.pop %v410
  %v427 = vrsqrt.pop %v411
  %v428 = vrsqrt.pop %v412
  %v429 = vrsqrt.pop %v413
  %v430 = vrsqrt.pop %v414
  %v431 = vrsqrt.pop %v415
  %v432 = vrsqrt.pop %v416
  %v433 = vrsqrt.pop %v417
  %v434 = vrsqrt.pop %v418
  %v435 = vrsqrt.pop %v419
  %v436 = vrsqrt.pop %v420
  %v437 = vrsqrt.pop %v421
  %v438 = vmul.f32 %v390, %v422
  %v439 = vmul.f32 %v391, %v423
  %v440 = vmul.f32 %v392, %v424
  %v441 = vmul.f32 %v393, %v425
  %v442 = vmul.f32 %v394, %v426
  %v443 = vmul.f32 %v395, %v427
  %v444 = vmul.f32 %v396, %v428
  %v445 = vmul.f32 %v397, %v429
  %v446 = vmul.f32 %v398, %v430
  %v447 = vmul.f32 %v399, %v431
  %v448 = vmul.f32 %v400, %v432
  %v449 = vmul.f32 %v401, %v433
  %v450 = vmul.f32 %v402, %v434
  %v451 = vmul.f32 %v403, %v435
  %v452 = vmul.f32 %v404, %v436
  %v453 = vmul.f32 %v405, %v437
  %v454 = vld [vmem:[%s3] sm:$0x1]
  %v456 = vlaneseq
  %v457 = vshrl.u32 %v456, 7
  %v458 = vsub.s32 0, %v457
  %v459 = vrot.slane %v454, %v458
  %v461 = vmul.f32 %v438, %v459
  %v462 = vmul.f32 %v439, %v459
  %v463 = vmul.f32 %v440, %v459
  %v464 = vmul.f32 %v441, %v459
  %v465 = vmul.f32 %v442, %v459
  %v466 = vmul.f32 %v443, %v459
  %v467 = vmul.f32 %v444, %v459
  %v468 = vmul.f32 %v445, %v459
  %v469 = vmul.f32 %v446, %v459
  %v470 = vmul.f32 %v447, %v459
  %v471 = vmul.f32 %v448, %v459
  %v472 = vmul.f32 %v449, %v459
  %v473 = vmul.f32 %v450, %v459
  %v474 = vmul.f32 %v451, %v459
  %v475 = vmul.f32 %v452, %v459
  %v476 = vmul.f32 %v453, %v459
  %v477 = vld [vmem:[%s4] sm:$0x1]
  %v479 = vlaneseq
  %v480 = vshrl.u32 %v479, 7
  %v481 = vsub.s32 0, %v480
  %v482 = vrot.slane %v477, %v481
  %v484 = vadd.f32 %v461, %v482
  %v485 = vadd.f32 %v462, %v482
  %v486 = vadd.f32 %v463, %v482
  %v487 = vadd.f32 %v464, %v482
  %v488 = vadd.f32 %v465, %v482
  %v489 = vadd.f32 %v466, %v482
  %v490 = vadd.f32 %v467, %v482
  %v491 = vadd.f32 %v468, %v482
  %v492 = vadd.f32 %v469, %v482
  %v493 = vadd.f32 %v470, %v482
  %v494 = vadd.f32 %v471, %v482
  %v495 = vadd.f32 %v472, %v482
  %v496 = vadd.f32 %v473, %v482
  %v497 = vadd.f32 %v474, %v482
  %v498 = vadd.f32 %v475, %v482
  %v499 = vadd.f32 %v476, %v482
  %v500 = vmul.f32 %v484, 0.5
  %v501 = vmul.f32 %v485, 0.5
  %v502 = vmul.f32 %v486, 0.5
  %v503 = vmul.f32 %v487, 0.5
  %v504 = vmul.f32 %v488, 0.5
  %v505 = vmul.f32 %v489, 0.5
  %v506 = vmul.f32 %v490, 0.5
  %v507 = vmul.f32 %v491, 0.5
  %v508 = vmul.f32 %v492, 0.5
  %v509 = vmul.f32 %v493, 0.5
  %v510 = vmul.f32 %v494, 0.5
  %v511 = vmul.f32 %v495, 0.5
  %v512 = vmul.f32 %v496, 0.5
  %v513 = vmul.f32 %v497, 0.5
  %v514 = vmul.f32 %v498, 0.5
  %v515 = vmul.f32 %v499, 0.5
  %v516 = vmul.f32 %v484, 0.70710677
  %v517 = vmul.f32 %v485, 0.70710677
  %v518 = vmul.f32 %v486, 0.70710677
  %v519 = vmul.f32 %v487, 0.70710677
  %v520 = vmul.f32 %v488, 0.70710677
  %v521 = vmul.f32 %v489, 0.70710677
  %v522 = vmul.f32 %v490, 0.70710677
  %v523 = vmul.f32 %v491, 0.70710677
  %v524 = vmul.f32 %v492, 0.70710677
  %v525 = vmul.f32 %v493, 0.70710677
  %v526 = vmul.f32 %v494, 0.70710677
  %v527 = vmul.f32 %v495, 0.70710677
  %v528 = vmul.f32 %v496, 0.70710677
  %v529 = vmul.f32 %v497, 0.70710677
  %v530 = vmul.f32 %v498, 0.70710677
  %v531 = vmul.f32 %v499, 0.70710677
  %v532 = verf.f32.pop %v516
  %v533 = verf.f32.pop %v517
  %v534 = verf.f32.pop %v518
  %v535 = verf.f32.pop %v519
  %v536 = verf.f32.pop %v520
  %v537 = verf.f32.pop %v521
  %v538 = verf.f32.pop %v522
  %v539 = verf.f32.pop %v523
  %v540 = verf.f32.pop %v524
  %v541 = verf.f32.pop %v525
  %v542 = verf.f32.pop %v526
  %v543 = verf.f32.pop %v527
  %v544 = verf.f32.pop %v528
  %v545 = verf.f32.pop %v529
  %v546 = verf.f32.pop %v530
  %v547 = verf.f32.pop %v531
  %v548 = vadd.f32 %v532, 1.0
  %v549 = vadd.f32 %v533, 1.0
  %v550 = vadd.f32 %v534, 1.0
  %v551 = vadd.f32 %v535, 1.0
  %v552 = vadd.f32 %v536, 1.0
  %v553 = vadd.f32 %v537, 1.0
  %v554 = vadd.f32 %v538, 1.0
  %v555 = vadd.f32 %v539, 1.0
  %v556 = vadd.f32 %v540, 1.0
  %v557 = vadd.f32 %v541, 1.0
  %v558 = vadd.f32 %v542, 1.0
  %v559 = vadd.f32 %v543, 1.0
  %v560 = vadd.f32 %v544, 1.0
  %v561 = vadd.f32 %v545, 1.0
  %v562 = vadd.f32 %v546, 1.0
  %v563 = vadd.f32 %v547, 1.0
  %v564 = vmul.f32 %v500, %v548
  %v565 = vmul.f32 %v501, %v549
  %v566 = vmul.f32 %v502, %v550
  %v567 = vmul.f32 %v503, %v551
  %v568 = vmul.f32 %v504, %v552
  %v569 = vmul.f32 %v505, %v553
  %v570 = vmul.f32 %v506, %v554
  %v571 = vmul.f32 %v507, %v555
  %v572 = vmul.f32 %v508, %v556
  %v573 = vmul.f32 %v509, %v557
  %v574 = vmul.f32 %v510, %v558
  %v575 = vmul.f32 %v511, %v559
  %v576 = vmul.f32 %v512, %v560
  %v577 = vmul.f32 %v513, %v561
  %v578 = vmul.f32 %v514, %v562
  %v579 = vmul.f32 %v515, %v563
  %v580 = vpack.c.bf16 %v565, %v564
  %v581 = vpack.c.bf16 %v567, %v566
  %v582 = vpack.c.bf16 %v569, %v568
  %v583 = vpack.c.bf16 %v571, %v570
  %v584 = vpack.c.bf16 %v573, %v572
  %v585 = vpack.c.bf16 %v575, %v574
  %v586 = vpack.c.bf16 %v577, %v576
  %v587 = vpack.c.bf16 %v579, %v578
  %v596 = vunpack.c.l.b16 %v580
  %v597 = vunpack.c.h.b16 %v580
  %v598 = vunpack.c.l.b16 %v581
  %v599 = vunpack.c.h.b16 %v581
  %v600 = vunpack.c.l.b16 %v582
  %v601 = vunpack.c.h.b16 %v582
  %v602 = vunpack.c.l.b16 %v583
  %v603 = vunpack.c.h.b16 %v583
  %v604 = vunpack.c.l.b16 %v584
  %v605 = vunpack.c.h.b16 %v584
  %v606 = vunpack.c.l.b16 %v585
  %v607 = vunpack.c.h.b16 %v585
  %v608 = vunpack.c.l.b16 %v586
  %v609 = vunpack.c.h.b16 %v586
  %v610 = vunpack.c.l.b16 %v587
  %v611 = vunpack.c.h.b16 %v587
  %v612 = vpack.c.b16 %v596, %v596
  %v613 = vpack.c.b16 %v597, %v597
  %v614 = vpack.c.b16 %v598, %v598
  %v615 = vpack.c.b16 %v599, %v599
  %v616 = vpack.c.b16 %v600, %v600
  %v617 = vpack.c.b16 %v601, %v601
  %v618 = vpack.c.b16 %v602, %v602
  %v619 = vpack.c.b16 %v603, %v603
  %v620 = vpack.c.b16 %v604, %v604
  %v621 = vpack.c.b16 %v605, %v605
  %v622 = vpack.c.b16 %v606, %v606
  %v623 = vpack.c.b16 %v607, %v607
  %v624 = vpack.c.b16 %v608, %v608
  %v625 = vpack.c.b16 %v609, %v609
  %v626 = vpack.c.b16 %v610, %v610
  %v627 = vpack.c.b16 %v611, %v611
  %644 = vst [vmem:[%s5] sm:$0xf] %v612
  %645 = vst [vmem:[%s5 + $0x4] sm:$0xf] %v613
  %646 = vst [vmem:[%s5 + $0x8] sm:$0xf] %v614
  %647 = vst [vmem:[%s5 + $0xc] sm:$0xf] %v615
  %648 = vst [vmem:[%s5 + $0x10] sm:$0xf] %v616
  %649 = vst [vmem:[%s5 + $0x14] sm:$0xf] %v617
  %650 = vst [vmem:[%s5 + $0x18] sm:$0xf] %v618
  %651 = vst [vmem:[%s5 + $0x1c] sm:$0xf] %v619
  %652 = vst [vmem:[%s5 + $0x20] sm:$0xf] %v620
  %653 = vst [vmem:[%s5 + $0x24] sm:$0xf] %v621
  %654 = vst [vmem:[%s5 + $0x28] sm:$0xf] %v622
  %655 = vst [vmem:[%s5 + $0x2c] sm:$0xf] %v623
  %656 = vst [vmem:[%s5 + $0x30] sm:$0xf] %v624
  %657 = vst [vmem:[%s5 + $0x34] sm:$0xf] %v625
  %658 = vst [vmem:[%s5 + $0x38] sm:$0xf] %v626
  %659 = vst [vmem:[%s5 + $0x3c] sm:$0xf] %v627
  // Predicated region
  $region22: #{stem_forward.2} parent=0 // pred_check
    _
  $region23: #{stem_forward.2} parent=0 // pred_check_branch
    %661 = sbr.rel (0) target = $region25
  $region24: #{stem_forward.2} parent=0 // pred_region
    _
  $region25: #{stem_forward.2} parent=0 // pred_fallthru
    _
  // Predicated region
  $region26: #{stem_forward.2} parent=0 // pred_check
    _
  $region27: #{stem_forward.2} parent=0 // pred_check_branch
    %663 = sbr.rel (0) target = $region29
  $region28: #{stem_forward.2} parent=0 // pred_region
    _
  $region29: #{stem_forward.2} parent=0 // pred_fallthru
    _

// kernel: stem_forward.3
$region0: #{stem_forward.3}
  #allocation0 [shape = 'u32[]', space=smem, size = 0x4, offset = 0x4, fixed_abs, tag = 'smem constant byte address 0x4 - core index']
  #allocation1 [shape = 'u32[144,128]{1,0:T(1,128)}', space=vmem, size = 0x12000, scoped, tag = 'internal scratch']
  %s0 = inlined_call_operand.vmem [shape: bf16[2,110,128], index: 0, kind: input, shape index: {}]
  %s1 = inlined_call_operand.vmem [shape: bf16[9,128,128], index: 1, kind: input, shape index: {}]
  %s2 = inlined_call_operand.vmem [shape: f32[1,128], index: 2, kind: input, shape index: {}]
  %s3 = inlined_call_operand.vmem [shape: f32[2,80,128], index: 3, kind: output, shape index: {}]
  %s4 = sld [smem:[#allocation0]]
  $region45: #{stem_forward.3} parent=0
    _
  %s6 = ssub.s32 1, %s4
  %s7 = scalar_select 0, %s6, %s4
  loop: start=0, step=1, limit=4
  $region2: #{stem_forward.3} parent=0 // loop_pre_header
    _
  $region3: #{stem_forward.3} parent=0 // loop_header
    %s9 = sphi 0, %s13
    %p10 = scmp.ge.s32.totalorder %s9, 4
    %s19 = sphi 0, %s21
    %s22 = sphi 0, %s19
    %s23 = sphi 0, %s22
    %s39 = sphi 0, %s23
    %s43 = sphi 0, %s43
    %s45 = sphi 0, %s43
    %s46 = sphi 0, %s45
    %s60 = sphi 0, %s46
    %s64 = sphi 0, %s64
    %s66 = sphi 0, %s64
    %s67 = sphi 0, %s66
    %s81 = sphi 0, %s67
    %s87 = sphi 0, %s89
    %s90 = sphi 0, %s87
    %s91 = sphi 0, %s90
    %s107 = sphi 0, %s91
  $region4: #{stem_forward.3} parent=0 // loop_header_branch
    %12 = sbr.rel (%p10) target = $region8
  $region5: #{stem_forward.3} parent=0 // loop_body
    %s14 = ssub.s32 %s9, 1
    %s15 = ssub.s32 %s9, 2
    %s16 = sadd.s32 %s9, 1
    %s17 = ssub.s32 %s9, %s16
    %p18 = scmp.eq.s32.totalorder %s17, 0
    %s20 = sadd.s32 %s19, 1
    %s21 = scalar_select %p18, %s19, %s20
    %p24 = pneg %p18
    %p25 = scmp.eq.s32.totalorder %s9, 1
    %p26 = por %p24, %p25
    %p27 = scmp.ne.s32.totalorder %s19, %s22
    %p28 = scmp.eq.s32.totalorder %s9, 0
    %p29 = por %p27, %p28
    %p30 = scmp.ne.s32.totalorder %s19, %s22
    %p31 = scmp.eq.s32.totalorder %s14, 1
    %p32 = por %p30, %p31
    %p33 = scmp.ne.s32.totalorder %s22, %s23
    %p34 = scmp.eq.s32.totalorder %s14, 0
    %p35 = por %p33, %p34
    %p36 = scmp.ne.s32.totalorder %s22, %s23
    %p37 = scmp.eq.s32.totalorder %s15, 1
    %p38 = por %p36, %p37
    %p40 = scmp.ne.s32.totalorder %s23, %s39
    %p41 = scmp.eq.s32.totalorder %s15, 0
    %p42 = por %p40, %p41
    %s44 = sadd.s32 %s43, 1
    %p47 = scmp.eq.s32.totalorder %s9, 1
    %p48 = scmp.ne.s32.totalorder %s43, %s45
    %p49 = scmp.eq.s32.totalorder %s9, 0
    %p50 = por %p48, %p49
    %p51 = scmp.ne.s32.totalorder %s43, %s45
    %p52 = scmp.eq.s32.totalorder %s14, 1
    %p53 = por %p51, %p52
    %p54 = scmp.ne.s32.totalorder %s45, %s46
    %p55 = scmp.eq.s32.totalorder %s14, 0
    %p56 = por %p54, %p55
    %p57 = scmp.ne.s32.totalorder %s45, %s46
    %p58 = scmp.eq.s32.totalorder %s15, 1
    %p59 = por %p57, %p58
    %p61 = scmp.ne.s32.totalorder %s46, %s60
    %p62 = scmp.eq.s32.totalorder %s15, 0
    %p63 = por %p61, %p62
    %s65 = sadd.s32 %s64, 1
    %p68 = scmp.eq.s32.totalorder %s9, 1
    %p69 = scmp.ne.s32.totalorder %s64, %s66
    %p70 = scmp.eq.s32.totalorder %s9, 0
    %p71 = por %p69, %p70
    %p72 = scmp.ne.s32.totalorder %s64, %s66
    %p73 = scmp.eq.s32.totalorder %s14, 1
    %p74 = por %p72, %p73
    %p75 = scmp.ne.s32.totalorder %s66, %s67
    %p76 = scmp.eq.s32.totalorder %s14, 0
    %p77 = por %p75, %p76
    %p78 = scmp.ne.s32.totalorder %s66, %s67
    %p79 = scmp.eq.s32.totalorder %s15, 1
    %p80 = por %p78, %p79
    %p82 = scmp.ne.s32.totalorder %s67, %s81
    %p83 = scmp.eq.s32.totalorder %s15, 0
    %p84 = por %p82, %p83
    %s85 = ssub.s32 %s9, %s16
    %p86 = scmp.eq.s32.totalorder %s85, 0
    %s88 = sadd.s32 %s87, 1
    %s89 = scalar_select %p86, %s87, %s88
    %p92 = pneg %p86
    %p93 = scmp.eq.s32.totalorder %s9, 1
    %p94 = por %p92, %p93
    %p95 = scmp.ne.s32.totalorder %s87, %s90
    %p96 = scmp.eq.s32.totalorder %s9, 0
    %p97 = por %p95, %p96
    %p98 = scmp.ne.s32.totalorder %s87, %s90
    %p99 = scmp.eq.s32.totalorder %s14, 1
    %p100 = por %p98, %p99
    %p101 = scmp.ne.s32.totalorder %s90, %s91
    %p102 = scmp.eq.s32.totalorder %s14, 0
    %p103 = por %p101, %p102
    %p104 = scmp.ne.s32.totalorder %s90, %s91
    %p105 = scmp.eq.s32.totalorder %s15, 1
    %p106 = por %p104, %p105
    %p108 = scmp.ne.s32.totalorder %s91, %s107
    %p109 = scmp.eq.s32.totalorder %s15, 0
    %p110 = por %p108, %p109
    %p111 = scmp.le.s32.totalorder 1, %s9
    %p112 = scmp.lt.s32.totalorder %s9, 3
    %p113 = pnand %p111, %p112
    %p114 = pneg %p113
    // Predicated region
    $region9: #{stem_forward.3} parent=5 // pred_check
      _
    $region10: #{stem_forward.3} parent=5 // pred_check_branch
      %116 = sbr.rel (%p113) target = $region12
    $region11: #{stem_forward.3} parent=5 // pred_region
      %s117 = ssub.s32 %s9, 1
      // Predicated region
      $region13: #{stem_forward.3} parent=11 // pred_check
        %p118 = pneg %p56
      $region14: #{stem_forward.3} parent=11 // pred_check_branch
        %120 = sbr.rel (%p118) target = $region16
      $region15: #{stem_forward.3} parent=11 // pred_region
        _
      $region16: #{stem_forward.3} parent=11 // pred_fallthru
        _
      // Predicated region
      $region17: #{stem_forward.3} parent=11 // pred_check
        %p121 = pneg %p77
      $region18: #{stem_forward.3} parent=11 // pred_check_branch
        %123 = sbr.rel (%p121) target = $region20
      $region19: #{stem_forward.3} parent=11 // pred_region
        _
      $region20: #{stem_forward.3} parent=11 // pred_fallthru
        _
    $region12: #{stem_forward.3} parent=5 // pred_fallthru
      _
    %p124 = scmp.lt.s32.totalorder %s9, 2
    // Predicated region
    $region21: #{stem_forward.3} parent=5 // pred_check
      %p125 = pneg %p124
    $region22: #{stem_forward.3} parent=5 // pred_check_branch
      %127 = sbr.rel (%p125) target = $region24
    $region23: #{stem_forward.3} parent=5 // pred_region
      // Predicated region
      $region25: #{stem_forward.3} parent=23 // pred_check
        %p128 = pneg %p29
      $region26: #{stem_forward.3} parent=23 // pred_check_branch
        %130 = sbr.rel (%p128) target = $region28
      $region27: #{stem_forward.3} parent=23 // pred_region
        %p131 = scmp.lt.s32.totalorder %s9, 1
        %s132 = scalar_select %p131, %s9, 1
        %s133 = smul.addr %s132, 14
        %s134 = smul.addr %s133, 4
        %s135 = scalar_lea.vmem %s0, %s134
      $region28: #{stem_forward.3} parent=23 // pred_fallthru
        _
    $region24: #{stem_forward.3} parent=5 // pred_fallthru
      _
    %p136 = scmp.le.s32.totalorder 1, %s9
    %p137 = scmp.lt.s32.totalorder %s9, 3
    %p138 = pnand %p136, %p137
    %p139 = pneg %p138
    // Predicated region
    $region29: #{stem_forward.3} parent=5 // pred_check
      _
    $region30: #{stem_forward.3} parent=5 // pred_check_branch
      %141 = sbr.rel (%p138) target = $region32
    $region31: #{stem_forward.3} parent=5 // pred_region
      %s142 = ssub.s32 %s9, 1
      %p143 = scmp.lt.s32.totalorder %s14, 1
      %s144 = scalar_select %p143, %s14, 1
      %s145 = smul.addr %s144, 14
      %s146 = smul.addr %s145, 4
      %s147 = scalar_lea.vmem %s0, %s146
      %p148 = pneg %p35
      %p149 = pneg %p32
      %p150 = pneg %p56
      %p151 = pneg %p53
      %p152 = pneg %p77
      %p153 = pneg %p74
      %p154 = pneg %p103
      %p155 = pneg %p100
      %p156 = scmp.lt.s32.totalorder %s14, 1
      %s157 = scalar_select %p156, %s14, 1
      %s158 = smul.addr %s157, 10
      %s159 = smul.addr %s158, 8
      %s160 = scalar_lea.vmem %s3, %s159
      %p161 = scmp.lt.s32.totalorder %s14, 1
      %s162 = scalar_select %p161, %s14, 1
      %s163 = smul.addr %s162, 14
      %s164 = smul.addr %s163, 4
      %s165 = scalar_lea.vmem %s0, %s164
      %p166 = scmp.lt.s32.totalorder %s14, 1
      %s167 = scalar_select %p166, %s14, 1
      %s168 = smul.addr %s167, 10
      %s169 = smul.addr %s168, 8
      %s170 = scalar_lea.vmem %s3, %s169
      %v172 = vld [vmem:[%s165] sm:$0xf]
      %v173 = vld [vmem:[%s165 + $0x4] sm:$0xf]
      %v174 = vld [vmem:[%s165 + $0x8] sm:$0xf]
      %v175 = vld [vmem:[%s165 + $0xc] sm:$0xf]
      %v176 = vld [vmem:[%s165 + $0x10] sm:$0xf]
      %v177 = vld [vmem:[%s165 + $0x14] sm:$0xf]
      %v178 = vld [vmem:[%s165 + $0x18] sm:$0xf]
      %v179 = vld [vmem:[%s165 + $0x1c] sm:$0xf]
      %v180 = vld [vmem:[%s165 + $0x20] sm:$0xf]
      %v181 = vld [vmem:[%s165 + $0x24] sm:$0xf]
      %v182 = vld [vmem:[%s1] sm:$0xf]
      %v183 = vld [vmem:[%s1 + $0x4] sm:$0xf]
      %v184 = vld [vmem:[%s1 + $0x8] sm:$0xf]
      %v185 = vld [vmem:[%s1 + $0xc] sm:$0xf]
      %v186 = vld [vmem:[%s1 + $0x10] sm:$0xf]
      %v187 = vld [vmem:[%s1 + $0x14] sm:$0xf]
      %v188 = vld [vmem:[%s1 + $0x18] sm:$0xf]
      %v189 = vld [vmem:[%s1 + $0x1c] sm:$0xf]
      %v190 = vld [vmem:[%s1 + $0x20] sm:$0xf]
      %v191 = vld [vmem:[%s1 + $0x24] sm:$0xf]
      %v192 = vld [vmem:[%s1 + $0x28] sm:$0xf]
      %v193 = vld [vmem:[%s1 + $0x2c] sm:$0xf]
      %v194 = vld [vmem:[%s1 + $0x30] sm:$0xf]
      %v195 = vld [vmem:[%s1 + $0x34] sm:$0xf]
      %v196 = vld [vmem:[%s1 + $0x38] sm:$0xf]
      %v197 = vld [vmem:[%s1 + $0x3c] sm:$0xf]
      %v198 = vld [vmem:[%s165 + $0x28] sm:$0x1]
      %s199 = scalar_lea.vmem %s1, 64
      %v200 = vld [vmem:[%s199] sm:$0xf]
      %v201 = vld [vmem:[%s199 + $0x4] sm:$0xf]
      %v202 = vld [vmem:[%s199 + $0x8] sm:$0xf]
      %v203 = vld [vmem:[%s199 + $0xc] sm:$0xf]
      %v204 = vld [vmem:[%s199 + $0x10] sm:$0xf]
      %v205 = vld [vmem:[%s199 + $0x14] sm:$0xf]
      %v206 = vld [vmem:[%s199 + $0x18] sm:$0xf]
      %v207 = vld [vmem:[%s199 + $0x1c] sm:$0xf]
      %v208 = vld [vmem:[%s199 + $0x20] sm:$0xf]
      %v209 = vld [vmem:[%s199 + $0x24] sm:$0xf]
      %v210 = vld [vmem:[%s199 + $0x28] sm:$0xf]
      %v211 = vld [vmem:[%s199 + $0x2c] sm:$0xf]
      %v212 = vld [vmem:[%s199 + $0x30] sm:$0xf]
      %v213 = vld [vmem:[%s199 + $0x34] sm:$0xf]
      %v214 = vld [vmem:[%s199 + $0x38] sm:$0xf]
      %v215 = vld [vmem:[%s199 + $0x3c] sm:$0xf]
      %v227 = vunpack.c.l.b16 %v172
      %v228 = vunpack.c.l.b16 %v173
      %v229 = vunpack.c.l.b16 %v174
      %v230 = vunpack.c.l.b16 %v175
      %v231 = vunpack.c.l.b16 %v176
      %v232 = vunpack.c.l.b16 %v177
      %v233 = vunpack.c.l.b16 %v178
      %v234 = vunpack.c.l.b16 %v179
      %v235 = vunpack.c.l.b16 %v180
      %v236 = vunpack.c.l.b16 %v181
      %v237 = vunpack.c.l.b16 %v198
      %v238 = vpack.c.b16 %v228, %v227
      %v239 = vpack.c.b16 %v230, %v229
      %v240 = vpack.c.b16 %v232, %v231
      %v241 = vpack.c.b16 %v234, %v233
      %v242 = vpack.c.b16 %v236, %v235
      %v243 = vpack.c.b16 %v237, %v237
      %vm244 = vsmask.f32 7424
      %v246 = vshrl.u32 %v238, 16
      %v248 = vshll.u32 %v238, 16
      %v250 = vrot.slane %v248, 1
      %v251 = vor.u32 %v246, %v250
      %v253 = vshll.u32 %v239, 16
      %v255 = vrot.slane %v253, 1
      %v256 = vsel %vm244, %v251, %v255
      %v257 = vshrl.u32 %v239, 16
      %v259 = vor.u32 %v257, %v255
      %v261 = vshll.u32 %v240, 16
      %v263 = vrot.slane %v261, 1
      %v264 = vsel %vm244, %v259, %v263
      %v265 = vshrl.u32 %v240, 16
      %v267 = vor.u32 %v265, %v263
      %v269 = vshll.u32 %v241, 16
      %v271 = vrot.slane %v269, 1
      %v272 = vsel %vm244, %v267, %v271
      %v273 = vshrl.u32 %v241, 16
      %v275 = vor.u32 %v273, %v271
      %v277 = vshll.u32 %v242, 16
      %v279 = vrot.slane %v277, 1
      %v280 = vsel %vm244, %v275, %v279
      %v281 = vshrl.u32 %v242, 16
      %v283 = vor.u32 %v281, %v279
      %v285 = vshll.u32 %v243, 16
      %v287 = vrot.slane %v285, 1
      %v288 = vsel %vm244, %v283, %v287
      %v310 = vunpack.c.l.b16 %v200
      %v311 = vunpack.c.l.b16 %v201
      %v312 = vunpack.c.l.b16 %v202
      %v313 = vunpack.c.l.b16 %v203
      %v314 = vunpack.c.l.b16 %v204
      %v315 = vunpack.c.l.b16 %v205
      %v316 = vunpack.c.l.b16 %v206
      %v317 = vunpack.c.l.b16 %v207
      %v318 = vunpack.c.l.b16 %v208
      %v319 = vunpack.c.l.b16 %v209
      %v320 = vunpack.c.l.b16 %v210
      %v321 = vunpack.c.l.b16 %v211
      %v322 = vunpack.c.l.b16 %v212
      %v323 = vunpack.c.l.b16 %v213
      %v324 = vunpack.c.l.b16 %v214
      %v325 = vunpack.c.l.b16 %v215
      %v326 = vpack.c.b16 %v311, %v310
      %v327 = vpack.c.b16 %v313, %v312
      %v328 = vpack.c.b16 %v315, %v314
      %v329 = vpack.c.b16 %v317, %v316
      %v330 = vpack.c.b16 %v319, %v318
      %v331 = vpack.c.b16 %v321, %v320
      %v332 = vpack.c.b16 %v323, %v322
      %v333 = vpack.c.b16 %v325, %v324
      %342 = vmatprep.subr.bf16.mxu0 0
      %343 = vmatpush1.bf16.msra.mxu0 %v333
      %344 = vmatprep.subr.bf16.mxu0 0
      %345 = vmatpush1.bf16.msra.mxu0 %v332
      %346 = vmatprep.subr.bf16.mxu0 0
      %347 = vmatpush1.bf16.msra.mxu0 %v331
      %348 = vmatprep.subr.bf16.mxu0 0
      %349 = vmatpush1.bf16.msra.mxu0 %v330
      %350 = vmatprep.subr.bf16.mxu0 0
      %351 = vmatpush1.bf16.msra.mxu0 %v329
      %352 = vmatprep.subr.bf16.mxu0 0
      %353 = vmatpush1.bf16.msra.mxu0 %v328
      %354 = vmatprep.subr.bf16.mxu0 0
      %355 = vmatpush1.bf16.msra.mxu0 %v327
      %356 = vmatprep.subr.bf16.mxu0 0
      %357 = vmatpush1.bf16.msra.mxu0 %v326
      %358 = vmatprep.subr.bf16.mxu0 0
      %359 = vmatpush2.bf16.msra.mxu0 0
      %360 = vmatprep.subr.bf16.mxu0 0
      %361 = vmatpush2.bf16.msra.mxu0 0
      %362 = vmatprep.subr.bf16.mxu0 0
      %363 = vmatpush2.bf16.msra.mxu0 0
      %364 = vmatprep.subr.bf16.mxu0 0
      %365 = vmatpush2.bf16.msra.mxu0 0
      %366 = vmatprep.subr.bf16.mxu0 0
      %367 = vmatpush2.bf16.msra.mxu0 0
      %368 = vmatprep.subr.bf16.mxu0 0
      %369 = vmatpush2.bf16.msra.mxu0 0
      %370 = vmatprep.subr.bf16.mxu0 0
      %371 = vmatpush2.bf16.msra.mxu0 0
      %372 = vmatprep.subr.bf16.mxu0 0
      %373 = vmatpush2.bf16.msra.mxu0 0
      %374 = vmatprep.mubr.bf16.mxu0 0
      %375 = vmatmul.mubr.bf16.gmra.mxu0 %v256
      %v376 = vpop.f32.mrf.mxu0
      %v377 = vadd.f32 0.0, %v376
      %v378 = vpop.f32.mrf.mxu0
      %v379 = vpop.f32.mrf.mxu0
      %v380 = vadd.f32 0.0, %v379
      %v381 = vpop.f32.mrf.mxu0
      %382 = vmatprep.mubr.bf16.mxu0 0
      %383 = vmatmul.mubr.bf16.gmra.mxu0 %v264
      %v384 = vpop.f32.mrf.mxu0
      %v385 = vadd.f32 0.0, %v384
      %v386 = vpop.f32.mrf.mxu0
      %v387 = vpop.f32.mrf.mxu0
      %v388 = vadd.f32 0.0, %v387
      %v389 = vpop.f32.mrf.mxu0
      %390 = vmatprep.mubr.bf16.mxu0 0
      %391 = vmatmul.mubr.bf16.gmra.mxu0 %v272
      %v392 = vpop.f32.mrf.mxu0
      %v393 = vadd.f32 0.0, %v392
      %v394 = vpop.f32.mrf.mxu0
      %v395 = vpop.f32.mrf.mxu0
      %v396 = vadd.f32 0.0, %v395
      %v397 = vpop.f32.mrf.mxu0
      %398 = vmatprep.mubr.bf16.mxu0 0
      %399 = vmatmul.mubr.bf16.gmra.mxu0 %v280
      %v400 = vpop.f32.mrf.mxu0
      %v401 = vadd.f32 0.0, %v400
      %v402 = vpop.f32.mrf.mxu0
      %v403 = vpop.f32.mrf.mxu0
      %v404 = vadd.f32 0.0, %v403
      %v405 = vpop.f32.mrf.mxu0
      %406 = vmatprep.mubr.bf16.mxu0 0
      %407 = vmatmul.mubr.bf16.gmra.mxu0 %v288
      %v408 = vpop.f32.mrf.mxu0
      %v409 = vadd.f32 0.0, %v408
      %v410 = vpop.f32.mrf.mxu0
      %v411 = vpop.f32.mrf.mxu0
      %v412 = vadd.f32 0.0, %v411
      %v413 = vpop.f32.mrf.mxu0
      %414 = vdwg.mxu0
      %v436 = vunpack.c.l.b16 %v182
      %v437 = vunpack.c.l.b16 %v183
      %v438 = vunpack.c.l.b16 %v184
      %v439 = vunpack.c.l.b16 %v185
      %v440 = vunpack.c.l.b16 %v186
      %v441 = vunpack.c.l.b16 %v187
      %v442 = vunpack.c.l.b16 %v188
      %v443 = vunpack.c.l.b16 %v189
      %v444 = vunpack.c.l.b16 %v190
      %v445 = vunpack.c.l.b16 %v191
      %v446 = vunpack.c.l.b16 %v192
      %v447 = vunpack.c.l.b16 %v193
      %v448 = vunpack.c.l.b16 %v194
      %v449 = vunpack.c.l.b16 %v195
      %v450 = vunpack.c.l.b16 %v196
      %v451 = vunpack.c.l.b16 %v197
      %v452 = vpack.c.b16 %v437, %v436
      %v453 = vpack.c.b16 %v439, %v438
      %v454 = vpack.c.b16 %v441, %v440
      %v455 = vpack.c.b16 %v443, %v442
      %v456 = vpack.c.b16 %v445, %v444
      %v457 = vpack.c.b16 %v447, %v446
      %v458 = vpack.c.b16 %v449, %v448
      %v459 = vpack.c.b16 %v451, %v450
      %468 = vmatprep.subr.bf16.mxu0 0
      %469 = vmatpush1.bf16.msra.mxu0 %v459
      %470 = vmatprep.subr.bf16.mxu0 0
      %471 = vmatpush1.bf16.msra.mxu0 %v458
      %472 = vmatprep.subr.bf16.mxu0 0
      %473 = vmatpush1.bf16.msra.mxu0 %v457
      %474 = vmatprep.subr.bf16.mxu0 0
      %475 = vmatpush1.bf16.msra.mxu0 %v456
      %476 = vmatprep.subr.bf16.mxu0 0
      %477 = vmatpush1.bf16.msra.mxu0 %v455
      %478 = vmatprep.subr.bf16.mxu0 0
      %479 = vmatpush1.bf16.msra.mxu0 %v454
      %480 = vmatprep.subr.bf16.mxu0 0
      %481 = vmatpush1.bf16.msra.mxu0 %v453
      %482 = vmatprep.subr.bf16.mxu0 0
      %483 = vmatpush1.bf16.msra.mxu0 %v452
      %484 = vmatprep.subr.bf16.mxu0 0
      %485 = vmatpush2.bf16.msra.mxu0 0
      %486 = vmatprep.subr.bf16.mxu0 0
      %487 = vmatpush2.bf16.msra.mxu0 0
      %488 = vmatprep.subr.bf16.mxu0 0
      %489 = vmatpush2.bf16.msra.mxu0 0
      %490 = vmatprep.subr.bf16.mxu0 0
      %491 = vmatpush2.bf16.msra.mxu0 0
      %492 = vmatprep.subr.bf16.mxu0 0
      %493 = vmatpush2.bf16.msra.mxu0 0
      %494 = vmatprep.subr.bf16.mxu0 0
      %495 = vmatpush2.bf16.msra.mxu0 0
      %496 = vmatprep.subr.bf16.mxu0 0
      %497 = vmatpush2.bf16.msra.mxu0 0
      %498 = vmatprep.subr.bf16.mxu0 0
      %499 = vmatpush2.bf16.msra.mxu0 0
      %500 = vmatprep.mubr.bf16.mxu0 0
      %501 = vmatmul.mubr.bf16.gmra.mxu0 %v238
      %v502 = vpop.f32.mrf.mxu0
      %v503 = vadd.f32 %v377, %v502
      %v504 = vpop.f32.mrf.mxu0
      %v505 = vpop.f32.mrf.mxu0
      %v506 = vadd.f32 %v380, %v505
      %v507 = vpop.f32.mrf.mxu0
      %508 = vmatprep.mubr.bf16.mxu0 0
      %509 = vmatmul.mubr.bf16.gmra.mxu0 %v239
      %v510 = vpop.f32.mrf.mxu0
      %v511 = vadd.f32 %v385, %v510
      %v512 = vpop.f32.mrf.mxu0
      %v513 = vpop.f32.mrf.mxu0
      %v514 = vadd.f32 %v388, %v513
      %v515 = vpop.f32.mrf.mxu0
      %516 = vmatprep.mubr.bf16.mxu0 0
      %517 = vmatmul.mubr.bf16.gmra.mxu0 %v240
      %v518 = vpop.f32.mrf.mxu0
      %v519 = vadd.f32 %v393, %v518
      %v520 = vpop.f32.mrf.mxu0
      %v521 = vpop.f32.mrf.mxu0
      %v522 = vadd.f32 %v396, %v521
      %v523 = vpop.f32.mrf.mxu0
      %524 = vmatprep.mubr.bf16.mxu0 0
      %525 = vmatmul.mubr.bf16.gmra.mxu0 %v241
      %v526 = vpop.f32.mrf.mxu0
      %v527 = vadd.f32 %v401, %v526
      %v528 = vpop.f32.mrf.mxu0
      %v529 = vpop.f32.mrf.mxu0
      %v530 = vadd.f32 %v404, %v529
      %v531 = vpop.f32.mrf.mxu0
      %532 = vmatprep.mubr.bf16.mxu0 0
      %533 = vmatmul.mubr.bf16.gmra.mxu0 %v242
      %v534 = vpop.f32.mrf.mxu0
      %v535 = vadd.f32 %v409, %v534
      %v536 = vpop.f32.mrf.mxu0
      %v537 = vpop.f32.mrf.mxu0
      %v538 = vadd.f32 %v412, %v537
      %v539 = vpop.f32.mrf.mxu0
      %540 = vdwg.mxu0
      %v541 = vld [vmem:[%s165] sm:$0xe]
      %s542 = scalar_lea.vmem %s1, 128
      %v543 = vld [vmem:[%s542] sm:$0xf]
      %v544 = vld [vmem:[%s542 + $0x4] sm:$0xf]
      %v545 = vld [vmem:[%s542 + $0x8] sm:$0xf]
      %v546 = vld [vmem:[%s542 + $0xc] sm:$0xf]
      %v547 = vld [vmem:[%s542 + $0x10] sm:$0xf]
      %v548 = vld [vmem:[%s542 + $0x14] sm:$0xf]
      %v549 = vld [vmem:[%s542 + $0x18] sm:$0xf]
      %v550 = vld [vmem:[%s542 + $0x1c] sm:$0xf]
      %v551 = vld [vmem:[%s542 + $0x20] sm:$0xf]
      %v552 = vld [vmem:[%s542 + $0x24] sm:$0xf]
      %v553 = vld [vmem:[%s542 + $0x28] sm:$0xf]
      %v554 = vld [vmem:[%s542 + $0x2c] sm:$0xf]
      %v555 = vld [vmem:[%s542 + $0x30] sm:$0xf]
      %v556 = vld [vmem:[%s542 + $0x34] sm:$0xf]
      %v557 = vld [vmem:[%s542 + $0x38] sm:$0xf]
      %v558 = vld [vmem:[%s542 + $0x3c] sm:$0xf]
      %v560 = vunpack.c.l.b16 %v541
      %v561 = vpack.c.b16 %v228, %v560
      %vm562 = vcmask 1046528
      %v563 = vrot.slane %v561, 1
      %v564 = vrot.slane %v239, 1
      %v565 = vsel %vm562, %v563, %v564
      %v566 = vrot.slane %v240, 1
      %v567 = vsel %vm562, %v564, %v566
      %v568 = vrot.slane %v241, 1
      %v569 = vsel %vm562, %v566, %v568
      %v570 = vrot.slane %v242, 1
      %v571 = vsel %vm562, %v568, %v570
      %v572 = vrot.slane %v243, 1
      %v573 = vsel %vm562, %v570, %v572
      %v595 = vunpack.c.l.b16 %v543
      %v596 = vunpack.c.l.b16 %v544
      %v597 = vunpack.c.l.b16 %v545
      %v598 = vunpack.c.l.b16 %v546
      %v599 = vunpack.c.l.b16 %v547
      %v600 = vunpack.c.l.b16 %v548
      %v601 = vunpack.c.l.b16 %v549
      %v602 = vunpack.c.l.b16 %v550
      %v603 = vunpack.c.l.b16 %v551
      %v604 = vunpack.c.l.b16 %v552
      %v605 = vunpack.c.l.b16 %v553
      %v606 = vunpack.c.l.b16 %v554
      %v607 = vunpack.c.l.b16 %v555
      %v608 = vunpack.c.l.b16 %v556
      %v609 = vunpack.c.l.b16 %v557
      %v610 = vunpack.c.l.b16 %v558
      %v611 = vpack.c.b16 %v596, %v595
      %v612 = vpack.c.b16 %v598, %v597
      %v613 = vpack.c.b16 %v600, %v599
      %v614 = vpack.c.b16 %v602, %v601
      %v615 = vpack.c.b16 %v604, %v603
      %v616 = vpack.c.b16 %v606, %v605
      %v617 = vpack.c.b16 %v608, %v607
      %v618 = vpack.c.b16 %v610, %v609
      %627 = vmatprep.subr.bf16.mxu0 0
      %628 = vmatpush1.bf16.msra.mxu0 %v618
      %629 = vmatprep.subr.bf16.mxu0 0
      %630 = vmatpush1.bf16.msra.mxu0 %v617
      %631 = vmatprep.subr.bf16.mxu0 0
      %632 = vmatpush1.bf16.msra.mxu0 %v616
      %633 = vmatprep.subr.bf16.mxu0 0
      %634 = vmatpush1.bf16.msra.mxu0 %v615
      %635 = vmatprep.subr.bf16.mxu0 0
      %636 = vmatpush1.bf16.msra.mxu0 %v614
      %637 = vmatprep.subr.bf16.mxu0 0
      %638 = vmatpush1.bf16.msra.mxu0 %v613
      %639 = vmatprep.subr.bf16.mxu0 0
      %640 = vmatpush1.bf16.msra.mxu0 %v612
      %641 = vmatprep.subr.bf16.mxu0 0
      %642 = vmatpush1.bf16.msra.mxu0 %v611
      %643 = vmatprep.subr.bf16.mxu0 0
      %644 = vmatpush2.bf16.msra.mxu0 0
      %645 = vmatprep.subr.bf16.mxu0 0
      %646 = vmatpush2.bf16.msra.mxu0 0
      %647 = vmatprep.subr.bf16.mxu0 0
      %648 = vmatpush2.bf16.msra.mxu0 0
      %649 = vmatprep.subr.bf16.mxu0 0
      %650 = vmatpush2.bf16.msra.mxu0 0
      %651 = vmatprep.subr.bf16.mxu0 0
      %652 = vmatpush2.bf16.msra.mxu0 0
      %653 = vmatprep.subr.bf16.mxu0 0
      %654 = vmatpush2.bf16.msra.mxu0 0
      %655 = vmatprep.subr.bf16.mxu0 0
      %656 = vmatpush2.bf16.msra.mxu0 0
      %657 = vmatprep.subr.bf16.mxu0 0
      %658 = vmatpush2.bf16.msra.mxu0 0
      %659 = vmatprep.mubr.bf16.mxu0 0
      %660 = vmatmul.mubr.bf16.gmra.mxu0 %v565
      %v661 = vpop.f32.mrf.mxu0
      %v662 = vadd.f32 0.0, %v661
      %v663 = vpop.f32.mrf.mxu0
      %v664 = vpop.f32.mrf.mxu0
      %v665 = vadd.f32 0.0, %v664
      %v666 = vpop.f32.mrf.mxu0
      %667 = vmatprep.mubr.bf16.mxu0 0
      %668 = vmatmul.mubr.bf16.gmra.mxu0 %v567
      %v669 = vpop.f32.mrf.mxu0
      %v670 = vadd.f32 0.0, %v669
      %v671 = vpop.f32.mrf.mxu0
      %v672 = vpop.f32.mrf.mxu0
      %v673 = vadd.f32 0.0, %v672
      %v674 = vpop.f32.mrf.mxu0
      %675 = vmatprep.mubr.bf16.mxu0 0
      %676 = vmatmul.mubr.bf16.gmra.mxu0 %v569
      %v677 = vpop.f32.mrf.mxu0
      %v678 = vadd.f32 0.0, %v677
      %v679 = vpop.f32.mrf.mxu0
      %v680 = vpop.f32.mrf.mxu0
      %v681 = vadd.f32 0.0, %v680
      %v682 = vpop.f32.mrf.mxu0
      %683 = vmatprep.mubr.bf16.mxu0 0
      %684 = vmatmul.mubr.bf16.gmra.mxu0 %v571
      %v685 = vpop.f32.mrf.mxu0
      %v686 = vadd.f32 0.0, %v685
      %v687 = vpop.f32.mrf.mxu0
      %v688 = vpop.f32.mrf.mxu0
      %v689 = vadd.f32 0.0, %v688
      %v690 = vpop.f32.mrf.mxu0
      %691 = vmatprep.mubr.bf16.mxu0 0
      %692 = vmatmul.mubr.bf16.gmra.mxu0 %v573
      %v693 = vpop.f32.mrf.mxu0
      %v694 = vadd.f32 0.0, %v693
      %v695 = vpop.f32.mrf.mxu0
      %v696 = vpop.f32.mrf.mxu0
      %v697 = vadd.f32 0.0, %v696
      %v698 = vpop.f32.mrf.mxu0
      %699 = vdwg.mxu0
      %v700 = vadd.f32 %v503, %v662
      %v701 = vadd.f32 %v506, %v665
      %v702 = vadd.f32 %v511, %v670
      %v703 = vadd.f32 %v514, %v673
      %v704 = vadd.f32 %v519, %v678
      %v705 = vadd.f32 %v522, %v681
      %v706 = vadd.f32 %v527, %v686
      %v707 = vadd.f32 %v530, %v689
      %v708 = vadd.f32 %v535, %v694
      %v709 = vadd.f32 %v538, %v697
      %v710 = vld [vmem:[%s165 + $0x4] sm:$0xe]
      %v711 = vld [vmem:[%s165 + $0x8] sm:$0xf]
      %v712 = vld [vmem:[%s165 + $0xc] sm:$0xf]
      %v713 = vld [vmem:[%s165 + $0x10] sm:$0xf]
      %v714 = vld [vmem:[%s165 + $0x14] sm:$0xf]
      %v715 = vld [vmem:[%s165 + $0x18] sm:$0xf]
      %v716 = vld [vmem:[%s165 + $0x1c] sm:$0xf]
      %v717 = vld [vmem:[%s165 + $0x20] sm:$0xf]
      %v718 = vld [vmem:[%s165 + $0x24] sm:$0xf]
      %v719 = vld [vmem:[%s165 + $0x28] sm:$0xf]
      %v720 = vld [vmem:[%s165 + $0x2c] sm:$0x1]
      %s721 = scalar_lea.vmem %s1, 192
      %v722 = vld [vmem:[%s721] sm:$0xf]
      %v723 = vld [vmem:[%s721 + $0x4] sm:$0xf]
      %v724 = vld [vmem:[%s721 + $0x8] sm:$0xf]
      %v725 = vld [vmem:[%s721 + $0xc] sm:$0xf]
      %v726 = vld [vmem:[%s721 + $0x10] sm:$0xf]
      %v727 = vld [vmem:[%s721 + $0x14] sm:$0xf]
      %v728 = vld [vmem:[%s721 + $0x18] sm:$0xf]
      %v729 = vld [vmem:[%s721 + $0x1c] sm:$0xf]
      %v730 = vld [vmem:[%s721 + $0x20] sm:$0xf]
      %v731 = vld [vmem:[%s721 + $0x24] sm:$0xf]
      %v732 = vld [vmem:[%s721 + $0x28] sm:$0xf]
      %v733 = vld [vmem:[%s721 + $0x2c] sm:$0xf]
      %v734 = vld [vmem:[%s721 + $0x30] sm:$0xf]
      %v735 = vld [vmem:[%s721 + $0x34] sm:$0xf]
      %v736 = vld [vmem:[%s721 + $0x38] sm:$0xf]
      %v737 = vld [vmem:[%s721 + $0x3c] sm:$0xf]
      %v749 = vunpack.c.l.b16 %v710
      %v750 = vunpack.c.l.b16 %v711
      %v751 = vunpack.c.l.b16 %v712
      %v752 = vunpack.c.l.b16 %v713
      %v753 = vunpack.c.l.b16 %v714
      %v754 = vunpack.c.l.b16 %v715
      %v755 = vunpack.c.l.b16 %v716
      %v756 = vunpack.c.l.b16 %v717
      %v757 = vunpack.c.l.b16 %v718
      %v758 = vunpack.c.l.b16 %v719
      %v759 = vunpack.c.l.b16 %v720
      %v760 = vpack.c.b16 %v750, %v749
      %v761 = vpack.c.b16 %v752, %v751
      %v762 = vpack.c.b16 %v754, %v753
      %v763 = vpack.c.b16 %v756, %v755
      %v764 = vpack.c.b16 %v758, %v757
      %v765 = vpack.c.b16 %v759, %v759
      %v766 = vrot.slane %v760, 1
      %v767 = vrot.slane %v761, 1
      %v768 = vsel %vm562, %v766, %v767
      %v769 = vrot.slane %v762, 1
      %v770 = vsel %vm562, %v767, %v769
      %v771 = vrot.slane %v763, 1
      %v772 = vsel %vm562, %v769, %v771
      %v773 = vrot.slane %v764, 1
      %v774 = vsel %vm562, %v771, %v773
      %v775 = vrot.slane %v765, 1
      %v776 = vsel %vm562, %v773, %v775
      %v798 = vunpack.c.l.b16 %v722
      %v799 = vunpack.c.l.b16 %v723
      %v800 = vunpack.c.l.b16 %v724
      %v801 = vunpack.c.l.b16 %v725
      %v802 = vunpack.c.l.b16 %v726
      %v803 = vunpack.c.l.b16 %v727
      %v804 = vunpack.c.l.b16 %v728
      %v805 = vunpack.c.l.b16 %v729
      %v806 = vunpack.c.l.b16 %v730
      %v807 = vunpack.c.l.b16 %v731
      %v808 = vunpack.c.l.b16 %v732
      %v809 = vunpack.c.l.b16 %v733
      %v810 = vunpack.c.l.b16 %v734
      %v811 = vunpack.c.l.b16 %v735
      %v812 = vunpack.c.l.b16 %v736
      %v813 = vunpack.c.l.b16 %v737
      %v814 = vpack.c.b16 %v799, %v798
      %v815 = vpack.c.b16 %v801, %v800
      %v816 = vpack.c.b16 %v803, %v802
      %v817 = vpack.c.b16 %v805, %v804
      %v818 = vpack.c.b16 %v807, %v806
      %v819 = vpack.c.b16 %v809, %v808
      %v820 = vpack.c.b16 %v811, %v810
      %v821 = vpack.c.b16 %v813, %v812
      %830 = vmatprep.subr.bf16.mxu0 0
      %831 = vmatpush1.bf16.msra.mxu0 %v821
      %832 = vmatprep.subr.bf16.mxu0 0
      %833 = vmatpush1.bf16.msra.mxu0 %v820
      %834 = vmatprep.subr.bf16.mxu0 0
      %835 = vmatpush1.bf16.msra.mxu0 %v819
      %836 = vmatprep.subr.bf16.mxu0 0
      %837 = vmatpush1.bf16.msra.mxu0 %v818
      %838 = vmatprep.subr.bf16.mxu0 0
      %839 = vmatpush1.bf16.msra.mxu0 %v817
      %840 = vmatprep.subr.bf16.mxu0 0
      %841 = vmatpush1.bf16.msra.mxu0 %v816
      %842 = vmatprep.subr.bf16.mxu0 0
      %843 = vmatpush1.bf16.msra.mxu0 %v815
      %844 = vmatprep.subr.bf16.mxu0 0
      %845 = vmatpush1.bf16.msra.mxu0 %v814
      %846 = vmatprep.subr.bf16.mxu0 0
      %847 = vmatpush2.bf16.msra.mxu0 0
      %848 = vmatprep.subr.bf16.mxu0 0
      %849 = vmatpush2.bf16.msra.mxu0 0
      %850 = vmatprep.subr.bf16.mxu0 0
      %851 = vmatpush2.bf16.msra.mxu0 0
      %852 = vmatprep.subr.bf16.mxu0 0
      %853 = vmatpush2.bf16.msra.mxu0 0
      %854 = vmatprep.subr.bf16.mxu0 0
      %855 = vmatpush2.bf16.msra.mxu0 0
      %856 = vmatprep.subr.bf16.mxu0 0
      %857 = vmatpush2.bf16.msra.mxu0 0
      %858 = vmatprep.subr.bf16.mxu0 0
      %859 = vmatpush2.bf16.msra.mxu0 0
      %860 = vmatprep.subr.bf16.mxu0 0
      %861 = vmatpush2.bf16.msra.mxu0 0
      %862 = vmatprep.mubr.bf16.mxu0 0
      %863 = vmatmul.mubr.bf16.gmra.mxu0 %v768
      %v864 = vpop.f32.mrf.mxu0
      %v865 = vadd.f32 0.0, %v864
      %v866 = vpop.f32.mrf.mxu0
      %v867 = vpop.f32.mrf.mxu0
      %v868 = vadd.f32 0.0, %v867
      %v869 = vpop.f32.mrf.mxu0
      %870 = vmatprep.mubr.bf16.mxu0 0
      %871 = vmatmul.mubr.bf16.gmra.mxu0 %v770
      %v872 = vpop.f32.mrf.mxu0
      %v873 = vadd.f32 0.0, %v872
      %v874 = vpop.f32.mrf.mxu0
      %v875 = vpop.f32.mrf.mxu0
      %v876 = vadd.f32 0.0, %v875
      %v877 = vpop.f32.mrf.mxu0
      %878 = vmatprep.mubr.bf16.mxu0 0
      %879 = vmatmul.mubr.bf16.gmra.mxu0 %v772
      %v880 = vpop.f32.mrf.mxu0
      %v881 = vadd.f32 0.0, %v880
      %v882 = vpop.f32.mrf.mxu0
      %v883 = vpop.f32.mrf.mxu0
      %v884 = vadd.f32 0.0, %v883
      %v885 = vpop.f32.mrf.mxu0
      %886 = vmatprep.mubr.bf16.mxu0 0
      %887 = vmatmul.mubr.bf16.gmra.mxu0 %v774
      %v888 = vpop.f32.mrf.mxu0
      %v889 = vadd.f32 0.0, %v888
      %v890 = vpop.f32.mrf.mxu0
      %v891 = vpop.f32.mrf.mxu0
      %v892 = vadd.f32 0.0, %v891
      %v893 = vpop.f32.mrf.mxu0
      %894 = vmatprep.mubr.bf16.mxu0 0
      %895 = vmatmul.mubr.bf16.gmra.mxu0 %v776
      %v896 = vpop.f32.mrf.mxu0
      %v897 = vadd.f32 0.0, %v896
      %v898 = vpop.f32.mrf.mxu0
      %v899 = vpop.f32.mrf.mxu0
      %v900 = vadd.f32 0.0, %v899
      %v901 = vpop.f32.mrf.mxu0
      %902 = vdwg.mxu0
      %v903 = vadd.f32 %v700, %v865
      %v904 = vadd.f32 %v701, %v868
      %v905 = vadd.f32 %v702, %v873
      %v906 = vadd.f32 %v703, %v876
      %v907 = vadd.f32 %v704, %v881
      %v908 = vadd.f32 %v705, %v884
      %v909 = vadd.f32 %v706, %v889
      %v910 = vadd.f32 %v707, %v892
      %v911 = vadd.f32 %v708, %v897
      %v912 = vadd.f32 %v709, %v900
      %v913 = vld [vmem:[%s165 + $0x2c] sm:$0x3]
      %s914 = scalar_lea.vmem %s1, 256
      %v915 = vld [vmem:[%s914] sm:$0xf]
      %v916 = vld [vmem:[%s914 + $0x4] sm:$0xf]
      %v917 = vld [vmem:[%s914 + $0x8] sm:$0xf]
      %v918 = vld [vmem:[%s914 + $0xc] sm:$0xf]
      %v919 = vld [vmem:[%s914 + $0x10] sm:$0xf]
      %v920 = vld [vmem:[%s914 + $0x14] sm:$0xf]
      %v921 = vld [vmem:[%s914 + $0x18] sm:$0xf]
      %v922 = vld [vmem:[%s914 + $0x1c] sm:$0xf]
      %v923 = vld [vmem:[%s914 + $0x20] sm:$0xf]
      %v924 = vld [vmem:[%s914 + $0x24] sm:$0xf]
      %v925 = vld [vmem:[%s914 + $0x28] sm:$0xf]
      %v926 = vld [vmem:[%s914 + $0x2c] sm:$0xf]
      %v927 = vld [vmem:[%s914 + $0x30] sm:$0xf]
      %v928 = vld [vmem:[%s914 + $0x34] sm:$0xf]
      %v929 = vld [vmem:[%s914 + $0x38] sm:$0xf]
      %v930 = vld [vmem:[%s914 + $0x3c] sm:$0xf]
      %v932 = vunpack.c.l.b16 %v913
      %v933 = vpack.c.b16 %v932, %v932
      %vm934 = vsmask.f32 6400
      %v936 = vshrl.u32 %v760, 16
      %v938 = vrot.slane %v936, 1
      %v939 = vshll.u32 %v760, 16
      %v941 = vrot.slane %v939, 2
      %v942 = vor.u32 %v938, %v941
      %v944 = vshrl.u32 %v761, 16
      %v946 = vrot.slane %v944, 1
      %v947 = vshll.u32 %v761, 16
      %v949 = vrot.slane %v947, 2
      %v950 = vor.u32 %v946, %v949
      %v951 = vsel %vm934, %v942, %v950
      %v953 = vshrl.u32 %v762, 16
      %v955 = vrot.slane %v953, 1
      %v956 = vshll.u32 %v762, 16
      %v958 = vrot.slane %v956, 2
      %v959 = vor.u32 %v955, %v958
      %v960 = vsel %vm934, %v950, %v959
      %v962 = vshrl.u32 %v763, 16
      %v964 = vrot.slane %v962, 1
      %v965 = vshll.u32 %v763, 16
      %v967 = vrot.slane %v965, 2
      %v968 = vor.u32 %v964, %v967
      %v969 = vsel %vm934, %v959, %v968
      %v971 = vshrl.u32 %v764, 16
      %v973 = vrot.slane %v971, 1
      %v974 = vshll.u32 %v764, 16
      %v976 = vrot.slane %v974, 2
      %v977 = vor.u32 %v973, %v976
      %v978 = vsel %vm934, %v968, %v977
      %v980 = vshrl.u32 %v933, 16
      %v982 = vrot.slane %v980, 1
      %v983 = vshll.u32 %v933, 16
      %v985 = vrot.slane %v983, 2
      %v986 = vor.u32 %v982, %v985
      %v987 = vsel %vm934, %v977, %v986
      %v1009 = vunpack.c.l.b16 %v915
      %v1010 = vunpack.c.l.b16 %v916
      %v1011 = vunpack.c.l.b16 %v917
      %v1012 = vunpack.c.l.b16 %v918
      %v1013 = vunpack.c.l.b16 %v919
      %v1014 = vunpack.c.l.b16 %v920
      %v1015 = vunpack.c.l.b16 %v921
      %v1016 = vunpack.c.l.b16 %v922
      %v1017 = vunpack.c.l.b16 %v923
      %v1018 = vunpack.c.l.b16 %v924
      %v1019 = vunpack.c.l.b16 %v925
      %v1020 = vunpack.c.l.b16 %v926
      %v1021 = vunpack.c.l.b16 %v927
      %v1022 = vunpack.c.l.b16 %v928
      %v1023 = vunpack.c.l.b16 %v929
      %v1024 = vunpack.c.l.b16 %v930
      %v1025 = vpack.c.b16 %v1010, %v1009
      %v1026 = vpack.c.b16 %v1012, %v1011
      %v1027 = vpack.c.b16 %v1014, %v1013
      %v1028 = vpack.c.b16 %v1016, %v1015
      %v1029 = vpack.c.b16 %v1018, %v1017
      %v1030 = vpack.c.b16 %v1020, %v1019
      %v1031 = vpack.c.b16 %v1022, %v1021
      %v1032 = vpack.c.b16 %v1024, %v1023
      %1041 = vmatprep.subr.bf16.mxu0 0
      %1042 = vmatpush1.bf16.msra.mxu0 %v1032
      %1043 = vmatprep.subr.bf16.mxu0 0
      %1044 = vmatpush1.bf16.msra.mxu0 %v1031
      %1045 = vmatprep.subr.bf16.mxu0 0
      %1046 = vmatpush1.bf16.msra.mxu0 %v1030
      %1047 = vmatprep.subr.bf16.mxu0 0
      %1048 = vmatpush1.bf16.msra.mxu0 %v1029
      %1049 = vmatprep.subr.bf16.mxu0 0
      %1050 = vmatpush1.bf16.msra.mxu0 %v1028
      %1051 = vmatprep.subr.bf16.mxu0 0
      %1052 = vmatpush1.bf16.msra.mxu0 %v1027
      %1053 = vmatprep.subr.bf16.mxu0 0
      %1054 = vmatpush1.bf16.msra.mxu0 %v1026
      %1055 = vmatprep.subr.bf16.mxu0 0
      %1056 = vmatpush1.bf16.msra.mxu0 %v1025
      %1057 = vmatprep.subr.bf16.mxu0 0
      %1058 = vmatpush2.bf16.msra.mxu0 0
      %1059 = vmatprep.subr.bf16.mxu0 0
      %1060 = vmatpush2.bf16.msra.mxu0 0
      %1061 = vmatprep.subr.bf16.mxu0 0
      %1062 = vmatpush2.bf16.msra.mxu0 0
      %1063 = vmatprep.subr.bf16.mxu0 0
      %1064 = vmatpush2.bf16.msra.mxu0 0
      %1065 = vmatprep.subr.bf16.mxu0 0
      %1066 = vmatpush2.bf16.msra.mxu0 0
      %1067 = vmatprep.subr.bf16.mxu0 0
      %1068 = vmatpush2.bf16.msra.mxu0 0
      %1069 = vmatprep.subr.bf16.mxu0 0
      %1070 = vmatpush2.bf16.msra.mxu0 0
      %1071 = vmatprep.subr.bf16.mxu0 0
      %1072 = vmatpush2.bf16.msra.mxu0 0
      %1073 = vmatprep.mubr.bf16.mxu0 0
      %1074 = vmatmul.mubr.bf16.gmra.mxu0 %v951
      %v1075 = vpop.f32.mrf.mxu0
      %v1076 = vadd.f32 0.0, %v1075
      %v1077 = vpop.f32.mrf.mxu0
      %v1078 = vpop.f32.mrf.mxu0
      %v1079 = vadd.f32 0.0, %v1078
      %v1080 = vpop.f32.mrf.mxu0
      %1081 = vmatprep.mubr.bf16.mxu0 0
      %1082 = vmatmul.mubr.bf16.gmra.mxu0 %v960
      %v1083 = vpop.f32.mrf.mxu0
      %v1084 = vadd.f32 0.0, %v1083
      %v1085 = vpop.f32.mrf.mxu0
      %v1086 = vpop.f32.mrf.mxu0
      %v1087 = vadd.f32 0.0, %v1086
      %v1088 = vpop.f32.mrf.mxu0
      %1089 = vmatprep.mubr.bf16.mxu0 0
      %1090 = vmatmul.mubr.bf16.gmra.mxu0 %v969
      %v1091 = vpop.f32.mrf.mxu0
      %v1092 = vadd.f32 0.0, %v1091
      %v1093 = vpop.f32.mrf.mxu0
      %v1094 = vpop.f32.mrf.mxu0
      %v1095 = vadd.f32 0.0, %v1094
      %v1096 = vpop.f32.mrf.mxu0
      %1097 = vmatprep.mubr.bf16.mxu0 0
      %1098 = vmatmul.mubr.bf16.gmra.mxu0 %v978
      %v1099 = vpop.f32.mrf.mxu0
      %v1100 = vadd.f32 0.0, %v1099
      %v1101 = vpop.f32.mrf.mxu0
      %v1102 = vpop.f32.mrf.mxu0
      %v1103 = vadd.f32 0.0, %v1102
      %v1104 = vpop.f32.mrf.mxu0
      %1105 = vmatprep.mubr.bf16.mxu0 0
      %1106 = vmatmul.mubr.bf16.gmra.mxu0 %v987
      %v1107 = vpop.f32.mrf.mxu0
      %v1108 = vadd.f32 0.0, %v1107
      %v1109 = vpop.f32.mrf.mxu0
      %v1110 = vpop.f32.mrf.mxu0
      %v1111 = vadd.f32 0.0, %v1110
      %v1112 = vpop.f32.mrf.mxu0
      %1113 = vdwg.mxu0
      %v1114 = vadd.f32 %v903, %v1076
      %v1115 = vadd.f32 %v904, %v1079
      %v1116 = vadd.f32 %v905, %v1084
      %v1117 = vadd.f32 %v906, %v1087
      %v1118 = vadd.f32 %v907, %v1092
      %v1119 = vadd.f32 %v908, %v1095
      %v1120 = vadd.f32 %v909, %v1100
      %v1121 = vadd.f32 %v910, %v1103
      %v1122 = vadd.f32 %v911, %v1108
      %v1123 = vadd.f32 %v912, %v1111
      %v1124 = vld [vmem:[%s165 + $0x4] sm:$0xc]
      %s1125 = scalar_lea.vmem %s1, 320
      %v1126 = vld [vmem:[%s1125] sm:$0xf]
      %v1127 = vld [vmem:[%s1125 + $0x4] sm:$0xf]
      %v1128 = vld [vmem:[%s1125 + $0x8] sm:$0xf]
      %v1129 = vld [vmem:[%s1125 + $0xc] sm:$0xf]
      %v1130 = vld [vmem:[%s1125 + $0x10] sm:$0xf]
      %v1131 = vld [vmem:[%s1125 + $0x14] sm:$0xf]
      %v1132 = vld [vmem:[%s1125 + $0x18] sm:$0xf]
      %v1133 = vld [vmem:[%s1125 + $0x1c] sm:$0xf]
      %v1134 = vld [vmem:[%s1125 + $0x20] sm:$0xf]
      %v1135 = vld [vmem:[%s1125 + $0x24] sm:$0xf]
      %v1136 = vld [vmem:[%s1125 + $0x28] sm:$0xf]
      %v1137 = vld [vmem:[%s1125 + $0x2c] sm:$0xf]
      %v1138 = vld [vmem:[%s1125 + $0x30] sm:$0xf]
      %v1139 = vld [vmem:[%s1125 + $0x34] sm:$0xf]
      %v1140 = vld [vmem:[%s1125 + $0x38] sm:$0xf]
      %v1141 = vld [vmem:[%s1125 + $0x3c] sm:$0xf]
      %v1143 = vunpack.c.l.b16 %v1124
      %v1144 = vpack.c.b16 %v750, %v1143
      %vm1145 = vcmask 1045504
      %v1146 = vrot.slane %v1144, 2
      %v1147 = vrot.slane %v761, 2
      %v1148 = vsel %vm1145, %v1146, %v1147
      %v1149 = vrot.slane %v762, 2
      %v1150 = vsel %vm1145, %v1147, %v1149
      %v1151 = vrot.slane %v763, 2
      %v1152 = vsel %vm1145, %v1149, %v1151
      %v1153 = vrot.slane %v764, 2
      %v1154 = vsel %vm1145, %v1151, %v1153
      %v1155 = vrot.slane %v933, 2
      %v1156 = vsel %vm1145, %v1153, %v1155
      %v1178 = vunpack.c.l.b16 %v1126
      %v1179 = vunpack.c.l.b16 %v1127
      %v1180 = vunpack.c.l.b16 %v1128
      %v1181 = vunpack.c.l.b16 %v1129
      %v1182 = vunpack.c.l.b16 %v1130
      %v1183 = vunpack.c.l.b16 %v1131
      %v1184 = vunpack.c.l.b16 %v1132
      %v1185 = vunpack.c.l.b16 %v1133
      %v1186 = vunpack.c.l.b16 %v1134
      %v1187 = vunpack.c.l.b16 %v1135
      %v1188 = vunpack.c.l.b16 %v1136
      %v1189 = vunpack.c.l.b16 %v1137
      %v1190 = vunpack.c.l.b16 %v1138
      %v1191 = vunpack.c.l.b16 %v1139
      %v1192 = vunpack.c.l.b16 %v1140
      %v1193 = vunpack.c.l.b16 %v1141
      %v1194 = vpack.c.b16 %v1179, %v1178
      %v1195 = vpack.c.b16 %v1181, %v1180
      %v1196 = vpack.c.b16 %v1183, %v1182
      %v1197 = vpack.c.b16 %v1185, %v1184
      %v1198 = vpack.c.b16 %v1187, %v1186
      %v1199 = vpack.c.b16 %v1189, %v1188
      %v1200 = vpack.c.b16 %v1191, %v1190
      %v1201 = vpack.c.b16 %v1193, %v1192
      %1210 = vmatprep.subr.bf16.mxu0 0
      %1211 = vmatpush1.bf16.msra.mxu0 %v1201
      %1212 = vmatprep.subr.bf16.mxu0 0
      %1213 = vmatpush1.bf16.msra.mxu0 %v1200
      %1214 = vmatprep.subr.bf16.mxu0 0
      %1215 = vmatpush1.bf16.msra.mxu0 %v1199
      %1216 = vmatprep.subr.bf16.mxu0 0
      %1217 = vmatpush1.bf16.msra.mxu0 %v1198
      %1218 = vmatprep.subr.bf16.mxu0 0
      %1219 = vmatpush1.bf16.msra.mxu0 %v1197
      %1220 = vmatprep.subr.bf16.mxu0 0
      %1221 = vmatpush1.bf16.msra.mxu0 %v1196
      %1222 = vmatprep.subr.bf16.mxu0 0
      %1223 = vmatpush1.bf16.msra.mxu0 %v1195
      %1224 = vmatprep.subr.bf16.mxu0 0
      %1225 = vmatpush1.bf16.msra.mxu0 %v1194
      %1226 = vmatprep.subr.bf16.mxu0 0
      %1227 = vmatpush2.bf16.msra.mxu0 0
      %1228 = vmatprep.subr.bf16.mxu0 0
      %1229 = vmatpush2.bf16.msra.mxu0 0
      %1230 = vmatprep.subr.bf16.mxu0 0
      %1231 = vmatpush2.bf16.msra.mxu0 0
      %1232 = vmatprep.subr.bf16.mxu0 0
      %1233 = vmatpush2.bf16.msra.mxu0 0
      %1234 = vmatprep.subr.bf16.mxu0 0
      %1235 = vmatpush2.bf16.msra.mxu0 0
      %1236 = vmatprep.subr.bf16.mxu0 0
      %1237 = vmatpush2.bf16.msra.mxu0 0
      %1238 = vmatprep.subr.bf16.mxu0 0
      %1239 = vmatpush2.bf16.msra.mxu0 0
      %1240 = vmatprep.subr.bf16.mxu0 0
      %1241 = vmatpush2.bf16.msra.mxu0 0
      %1242 = vmatprep.mubr.bf16.mxu0 0
      %1243 = vmatmul.mubr.bf16.gmra.mxu0 %v1148
      %v1244 = vpop.f32.mrf.mxu0
      %v1245 = vadd.f32 0.0, %v1244
      %v1246 = vpop.f32.mrf.mxu0
      %v1247 = vpop.f32.mrf.mxu0
      %v1248 = vadd.f32 0.0, %v1247
      %v1249 = vpop.f32.mrf.mxu0
      %1250 = vmatprep.mubr.bf16.mxu0 0
      %1251 = vmatmul.mubr.bf16.gmra.mxu0 %v1150
      %v1252 = vpop.f32.mrf.mxu0
      %v1253 = vadd.f32 0.0, %v1252
      %v1254 = vpop.f32.mrf.mxu0
      %v1255 = vpop.f32.mrf.mxu0
      %v1256 = vadd.f32 0.0, %v1255
      %v1257 = vpop.f32.mrf.mxu0
      %1258 = vmatprep.mubr.bf16.mxu0 0
      %1259 = vmatmul.mubr.bf16.gmra.mxu0 %v1152
      %v1260 = vpop.f32.mrf.mxu0
      %v1261 = vadd.f32 0.0, %v1260
      %v1262 = vpop.f32.mrf.mxu0
      %v1263 = vpop.f32.mrf.mxu0
      %v1264 = vadd.f32 0.0, %v1263
      %v1265 = vpop.f32.mrf.mxu0
      %1266 = vmatprep.mubr.bf16.mxu0 0
      %1267 = vmatmul.mubr.bf16.gmra.mxu0 %v1154
      %v1268 = vpop.f32.mrf.mxu0
      %v1269 = vadd.f32 0.0, %v1268
      %v1270 = vpop.f32.mrf.mxu0
      %v1271 = vpop.f32.mrf.mxu0
      %v1272 = vadd.f32 0.0, %v1271
      %v1273 = vpop.f32.mrf.mxu0
      %1274 = vmatprep.mubr.bf16.mxu0 0
      %1275 = vmatmul.mubr.bf16.gmra.mxu0 %v1156
      %v1276 = vpop.f32.mrf.mxu0
      %v1277 = vadd.f32 0.0, %v1276
      %v1278 = vpop.f32.mrf.mxu0
      %v1279 = vpop.f32.mrf.mxu0
      %v1280 = vadd.f32 0.0, %v1279
      %v1281 = vpop.f32.mrf.mxu0
      %1282 = vdwg.mxu0
      %v1283 = vadd.f32 %v1114, %v1245
      %v1284 = vadd.f32 %v1115, %v1248
      %v1285 = vadd.f32 %v1116, %v1253
      %v1286 = vadd.f32 %v1117, %v1256
      %v1287 = vadd.f32 %v1118, %v1261
      %v1288 = vadd.f32 %v1119, %v1264
      %v1289 = vadd.f32 %v1120, %v1269
      %v1290 = vadd.f32 %v1121, %v1272
      %v1291 = vadd.f32 %v1122, %v1277
      %v1292 = vadd.f32 %v1123, %v1280
      %v1293 = vld [vmem:[%s165 + $0x8] sm:$0xc]
      %v1294 = vld [vmem:[%s165 + $0xc] sm:$0xf]
      %v1295 = vld [vmem:[%s165 + $0x10] sm:$0xf]
      %v1296 = vld [vmem:[%s165 + $0x14] sm:$0xf]
      %v1297 = vld [vmem:[%s165 + $0x18] sm:$0xf]
      %v1298 = vld [vmem:[%s165 + $0x1c] sm:$0xf]
      %v1299 = vld [vmem:[%s165 + $0x20] sm:$0xf]
      %v1300 = vld [vmem:[%s165 + $0x24] sm:$0xf]
      %v1301 = vld [vmem:[%s165 + $0x28] sm:$0xf]
      %v1302 = vld [vmem:[%s165 + $0x2c] sm:$0xf]
      %v1303 = vld [vmem:[%s165 + $0x30] sm:$0x3]
      %s1304 = scalar_lea.vmem %s1, 384
      %v1305 = vld [vmem:[%s1304] sm:$0xf]
      %v1306 = vld [vmem:[%s1304 + $0x4] sm:$0xf]
      %v1307 = vld [vmem:[%s1304 + $0x8] sm:$0xf]
      %v1308 = vld [vmem:[%s1304 + $0xc] sm:$0xf]
      %v1309 = vld [vmem:[%s1304 + $0x10] sm:$0xf]
      %v1310 = vld [vmem:[%s1304 + $0x14] sm:$0xf]
      %v1311 = vld [vmem:[%s1304 + $0x18] sm:$0xf]
      %v1312 = vld [vmem:[%s1304 + $0x1c] sm:$0xf]
      %v1313 = vld [vmem:[%s1304 + $0x20] sm:$0xf]
      %v1314 = vld [vmem:[%s1304 + $0x24] sm:$0xf]
      %v1315 = vld [vmem:[%s1304 + $0x28] sm:$0xf]
      %v1316 = vld [vmem:[%s1304 + $0x2c] sm:$0xf]
      %v1317 = vld [vmem:[%s1304 + $0x30] sm:$0xf]
      %v1318 = vld [vmem:[%s1304 + $0x34] sm:$0xf]
      %v1319 = vld [vmem:[%s1304 + $0x38] sm:$0xf]
      %v1320 = vld [vmem:[%s1304 + $0x3c] sm:$0xf]
      %v1332 = vunpack.c.l.b16 %v1293
      %v1333 = vunpack.c.l.b16 %v1294
      %v1334 = vunpack.c.l.b16 %v1295
      %v1335 = vunpack.c.l.b16 %v1296
      %v1336 = vunpack.c.l.b16 %v1297
      %v1337 = vunpack.c.l.b16 %v1298
      %v1338 = vunpack.c.l.b16 %v1299
      %v1339 = vunpack.c.l.b16 %v1300
      %v1340 = vunpack.c.l.b16 %v1301
      %v1341 = vunpack.c.l.b16 %v1302
      %v1342 = vunpack.c.l.b16 %v1303
      %v1343 = vpack.c.b16 %v1333, %v1332
      %v1344 = vpack.c.b16 %v1335, %v1334
      %v1345 = vpack.c.b16 %v1337, %v1336
      %v1346 = vpack.c.b16 %v1339, %v1338
      %v1347 = vpack.c.b16 %v1341, %v1340
      %v1348 = vpack.c.b16 %v1342, %v1342
      %v1349 = vrot.slane %v1343, 2
      %v1350 = vrot.slane %v1344, 2
      %v1351 = vsel %vm1145, %v1349, %v1350
      %v1352 = vrot.slane %v1345, 2
      %v1353 = vsel %vm1145, %v1350, %v1352
      %v1354 = vrot.slane %v1346, 2
      %v1355 = vsel %vm1145, %v1352, %v1354
      %v1356 = vrot.slane %v1347, 2
      %v1357 = vsel %vm1145, %v1354, %v1356
      %v1358 = vrot.slane %v1348, 2
      %v1359 = vsel %vm1145, %v1356, %v1358
      %v1381 = vunpack.c.l.b16 %v1305
      %v1382 = vunpack.c.l.b16 %v1306
      %v1383 = vunpack.c.l.b16 %v1307
      %v1384 = vunpack.c.l.b16 %v1308
      %v1385 = vunpack.c.l.b16 %v1309
      %v1386 = vunpack.c.l.b16 %v1310
      %v1387 = vunpack.c.l.b16 %v1311
      %v1388 = vunpack.c.l.b16 %v1312
      %v1389 = vunpack.c.l.b16 %v1313
      %v1390 = vunpack.c.l.b16 %v1314
      %v1391 = vunpack.c.l.b16 %v1315
      %v1392 = vunpack.c.l.b16 %v1316
      %v1393 = vunpack.c.l.b16 %v1317
      %v1394 = vunpack.c.l.b16 %v1318
      %v1395 = vunpack.c.l.b16 %v1319
      %v1396 = vunpack.c.l.b16 %v1320
      %v1397 = vpack.c.b16 %v1382, %v1381
      %v1398 = vpack.c.b16 %v1384, %v1383
      %v1399 = vpack.c.b16 %v1386, %v1385
      %v1400 = vpack.c.b16 %v1388, %v1387
      %v1401 = vpack.c.b16 %v1390, %v1389
      %v1402 = vpack.c.b16 %v1392, %v1391
      %v1403 = vpack.c.b16 %v1394, %v1393
      %v1404 = vpack.c.b16 %v1396, %v1395
      %1413 = vmatprep.subr.bf16.mxu0 0
      %1414 = vmatpush1.bf16.msra.mxu0 %v1404
      %1415 = vmatprep.subr.bf16.mxu0 0
      %1416 = vmatpush1.bf16.msra.mxu0 %v1403
      %1417 = vmatprep.subr.bf16.mxu0 0
      %1418 = vmatpush1.bf16.msra.mxu0 %v1402
      %1419 = vmatprep.subr.bf16.mxu0 0
      %1420 = vmatpush1.bf16.msra.mxu0 %v1401
      %1421 = vmatprep.subr.bf16.mxu0 0
      %1422 = vmatpush1.bf16.msra.mxu0 %v1400
      %1423 = vmatprep.subr.bf16.mxu0 0
      %1424 = vmatpush1.bf16.msra.mxu0 %v1399
      %1425 = vmatprep.subr.bf16.mxu0 0
      %1426 = vmatpush1.bf16.msra.mxu0 %v1398
      %1427 = vmatprep.subr.bf16.mxu0 0
      %1428 = vmatpush1.bf16.msra.mxu0 %v1397
      %1429 = vmatprep.subr.bf16.mxu0 0
      %1430 = vmatpush2.bf16.msra.mxu0 0
      %1431 = vmatprep.subr.bf16.mxu0 0
      %1432 = vmatpush2.bf16.msra.mxu0 0
      %1433 = vmatprep.subr.bf16.mxu0 0
      %1434 = vmatpush2.bf16.msra.mxu0 0
      %1435 = vmatprep.subr.bf16.mxu0 0
      %1436 = vmatpush2.bf16.msra.mxu0 0
      %1437 = vmatprep.subr.bf16.mxu0 0
      %1438 = vmatpush2.bf16.msra.mxu0 0
      %1439 = vmatprep.subr.bf16.mxu0 0
      %1440 = vmatpush2.bf16.msra.mxu0 0
      %1441 = vmatprep.subr.bf16.mxu0 0
      %1442 = vmatpush2.bf16.msra.mxu0 0
      %1443 = vmatprep.subr.bf16.mxu0 0
      %1444 = vmatpush2.bf16.msra.mxu0 0
      %1445 = vmatprep.mubr.bf16.mxu0 0
      %1446 = vmatmul.mubr.bf16.gmra.mxu0 %v1351
      %v1447 = vpop.f32.mrf.mxu0
      %v1448 = vadd.f32 0.0, %v1447
      %v1449 = vpop.f32.mrf.mxu0
      %v1450 = vpop.f32.mrf.mxu0
      %v1451 = vadd.f32 0.0, %v1450
      %v1452 = vpop.f32.mrf.mxu0
      %1453 = vmatprep.mubr.bf16.mxu0 0
      %1454 = vmatmul.mubr.bf16.gmra.mxu0 %v1353
      %v1455 = vpop.f32.mrf.mxu0
      %v1456 = vadd.f32 0.0, %v1455
      %v1457 = vpop.f32.mrf.mxu0
      %v1458 = vpop.f32.mrf.mxu0
      %v1459 = vadd.f32 0.0, %v1458
      %v1460 = vpop.f32.mrf.mxu0
      %1461 = vmatprep.mubr.bf16.mxu0 0
      %1462 = vmatmul.mubr.bf16.gmra.mxu0 %v1355
      %v1463 = vpop.f32.mrf.mxu0
      %v1464 = vadd.f32 0.0, %v1463
      %v1465 = vpop.f32.mrf.mxu0
      %v1466 = vpop.f32.mrf.mxu0
      %v1467 = vadd.f32 0.0, %v1466
      %v1468 = vpop.f32.mrf.mxu0
      %1469 = vmatprep.mubr.bf16.mxu0 0
      %1470 = vmatmul.mubr.bf16.gmra.mxu0 %v1357
      %v1471 = vpop.f32.mrf.mxu0
      %v1472 = vadd.f32 0.0, %v1471
      %v1473 = vpop.f32.mrf.mxu0
      %v1474 = vpop.f32.mrf.mxu0
      %v1475 = vadd.f32 0.0, %v1474
      %v1476 = vpop.f32.mrf.mxu0
      %1477 = vmatprep.mubr.bf16.mxu0 0
      %1478 = vmatmul.mubr.bf16.gmra.mxu0 %v1359
      %v1479 = vpop.f32.mrf.mxu0
      %v1480 = vadd.f32 0.0, %v1479
      %v1481 = vpop.f32.mrf.mxu0
      %v1482 = vpop.f32.mrf.mxu0
      %v1483 = vadd.f32 0.0, %v1482
      %v1484 = vpop.f32.mrf.mxu0
      %1485 = vdwg.mxu0
      %v1486 = vadd.f32 %v1283, %v1448
      %v1487 = vadd.f32 %v1284, %v1451
      %v1488 = vadd.f32 %v1285, %v1456
      %v1489 = vadd.f32 %v1286, %v1459
      %v1490 = vadd.f32 %v1287, %v1464
      %v1491 = vadd.f32 %v1288, %v1467
      %v1492 = vadd.f32 %v1289, %v1472
      %v1493 = vadd.f32 %v1290, %v1475
      %v1494 = vadd.f32 %v1291, %v1480
      %v1495 = vadd.f32 %v1292, %v1483
      %v1496 = vld [vmem:[%s165 + $0x30] sm:$0x7]
      %s1497 = scalar_lea.vmem %s1, 448
      %v1498 = vld [vmem:[%s1497] sm:$0xf]
      %v1499 = vld [vmem:[%s1497 + $0x4] sm:$0xf]
      %v1500 = vld [vmem:[%s1497 + $0x8] sm:$0xf]
      %v1501 = vld [vmem:[%s1497 + $0xc] sm:$0xf]
      %v1502 = vld [vmem:[%s1497 + $0x10] sm:$0xf]
      %v1503 = vld [vmem:[%s1497 + $0x14] sm:$0xf]
      %v1504 = vld [vmem:[%s1497 + $0x18] sm:$0xf]
      %v1505 = vld [vmem:[%s1497 + $0x1c] sm:$0xf]
      %v1506 = vld [vmem:[%s1497 + $0x20] sm:$0xf]
      %v1507 = vld [vmem:[%s1497 + $0x24] sm:$0xf]
      %v1508 = vld [vmem:[%s1497 + $0x28] sm:$0xf]
      %v1509 = vld [vmem:[%s1497 + $0x2c] sm:$0xf]
      %v1510 = vld [vmem:[%s1497 + $0x30] sm:$0xf]
      %v1511 = vld [vmem:[%s1497 + $0x34] sm:$0xf]
      %v1512 = vld [vmem:[%s1497 + $0x38] sm:$0xf]
      %v1513 = vld [vmem:[%s1497 + $0x3c] sm:$0xf]
      %v1515 = vunpack.c.l.b16 %v1496
      %v1516 = vpack.c.b16 %v1515, %v1515
      %vm1517 = vsmask.f32 5376
      %v1519 = vshrl.u32 %v1343, 16
      %v1521 = vrot.slane %v1519, 2
      %v1522 = vshll.u32 %v1343, 16
      %v1524 = vrot.slane %v1522, 3
      %v1525 = vor.u32 %v1521, %v1524
      %v1527 = vshrl.u32 %v1344, 16
      %v1529 = vrot.slane %v1527, 2
      %v1530 = vshll.u32 %v1344, 16
      %v1532 = vrot.slane %v1530, 3
      %v1533 = vor.u32 %v1529, %v1532
      %v1534 = vsel %vm1517, %v1525, %v1533
      %v1536 = vshrl.u32 %v1345, 16
      %v1538 = vrot.slane %v1536, 2
      %v1539 = vshll.u32 %v1345, 16
      %v1541 = vrot.slane %v1539, 3
      %v1542 = vor.u32 %v1538, %v1541
      %v1543 = vsel %vm1517, %v1533, %v1542
      %v1545 = vshrl.u32 %v1346, 16
      %v1547 = vrot.slane %v1545, 2
      %v1548 = vshll.u32 %v1346, 16
      %v1550 = vrot.slane %v1548, 3
      %v1551 = vor.u32 %v1547, %v1550
      %v1552 = vsel %vm1517, %v1542, %v1551
      %v1554 = vshrl.u32 %v1347, 16
      %v1556 = vrot.slane %v1554, 2
      %v1557 = vshll.u32 %v1347, 16
      %v1559 = vrot.slane %v1557, 3
      %v1560 = vor.u32 %v1556, %v1559
      %v1561 = vsel %vm1517, %v1551, %v1560
      %v1563 = vshrl.u32 %v1516, 16
      %v1565 = vrot.slane %v1563, 2
      %v1566 = vshll.u32 %v1516, 16
      %v1568 = vrot.slane %v1566, 3
      %v1569 = vor.u32 %v1565, %v1568
      %v1570 = vsel %vm1517, %v1560, %v1569
      %v1592 = vunpack.c.l.b16 %v1498
      %v1593 = vunpack.c.l.b16 %v1499
      %v1594 = vunpack.c.l.b16 %v1500
      %v1595 = vunpack.c.l.b16 %v1501
      %v1596 = vunpack.c.l.b16 %v1502
      %v1597 = vunpack.c.l.b16 %v1503
      %v1598 = vunpack.c.l.b16 %v1504
      %v1599 = vunpack.c.l.b16 %v1505
      %v1600 = vunpack.c.l.b16 %v1506
      %v1601 = vunpack.c.l.b16 %v1507
      %v1602 = vunpack.c.l.b16 %v1508
      %v1603 = vunpack.c.l.b16 %v1509
      %v1604 = vunpack.c.l.b16 %v1510
      %v1605 = vunpack.c.l.b16 %v1511
      %v1606 = vunpack.c.l.b16 %v1512
      %v1607 = vunpack.c.l.b16 %v1513
      %v1608 = vpack.c.b16 %v1593, %v1592
      %v1609 = vpack.c.b16 %v1595, %v1594
      %v1610 = vpack.c.b16 %v1597, %v1596
      %v1611 = vpack.c.b16 %v1599, %v1598
      %v1612 = vpack.c.b16 %v1601, %v1600
      %v1613 = vpack.c.b16 %v1603, %v1602
      %v1614 = vpack.c.b16 %v1605, %v1604
      %v1615 = vpack.c.b16 %v1607, %v1606
      %1624 = vmatprep.subr.bf16.mxu0 0
      %1625 = vmatpush1.bf16.msra.mxu0 %v1615
      %1626 = vmatprep.subr.bf16.mxu0 0
      %1627 = vmatpush1.bf16.msra.mxu0 %v1614
      %1628 = vmatprep.subr.bf16.mxu0 0
      %1629 = vmatpush1.bf16.msra.mxu0 %v1613
      %1630 = vmatprep.subr.bf16.mxu0 0
      %1631 = vmatpush1.bf16.msra.mxu0 %v1612
      %1632 = vmatprep.subr.bf16.mxu0 0
      %1633 = vmatpush1.bf16.msra.mxu0 %v1611
      %1634 = vmatprep.subr.bf16.mxu0 0
      %1635 = vmatpush1.bf16.msra.mxu0 %v1610
      %1636 = vmatprep.subr.bf16.mxu0 0
      %1637 = vmatpush1.bf16.msra.mxu0 %v1609
      %1638 = vmatprep.subr.bf16.mxu0 0
      %1639 = vmatpush1.bf16.msra.mxu0 %v1608
      %1640 = vmatprep.subr.bf16.mxu0 0
      %1641 = vmatpush2.bf16.msra.mxu0 0
      %1642 = vmatprep.subr.bf16.mxu0 0
      %1643 = vmatpush2.bf16.msra.mxu0 0
      %1644 = vmatprep.subr.bf16.mxu0 0
      %1645 = vmatpush2.bf16.msra.mxu0 0
      %1646 = vmatprep.subr.bf16.mxu0 0
      %1647 = vmatpush2.bf16.msra.mxu0 0
      %1648 = vmatprep.subr.bf16.mxu0 0
      %1649 = vmatpush2.bf16.msra.mxu0 0
      %1650 = vmatprep.subr.bf16.mxu0 0
      %1651 = vmatpush2.bf16.msra.mxu0 0
      %1652 = vmatprep.subr.bf16.mxu0 0
      %1653 = vmatpush2.bf16.msra.mxu0 0
      %1654 = vmatprep.subr.bf16.mxu0 0
      %1655 = vmatpush2.bf16.msra.mxu0 0
      %1656 = vmatprep.mubr.bf16.mxu0 0
      %1657 = vmatmul.mubr.bf16.gmra.mxu0 %v1534
      %v1658 = vpop.f32.mrf.mxu0
      %v1659 = vadd.f32 0.0, %v1658
      %v1660 = vpop.f32.mrf.mxu0
      %v1661 = vpop.f32.mrf.mxu0
      %v1662 = vadd.f32 0.0, %v1661
      %v1663 = vpop.f32.mrf.mxu0
      %1664 = vmatprep.mubr.bf16.mxu0 0
      %1665 = vmatmul.mubr.bf16.gmra.mxu0 %v1543
      %v1666 = vpop.f32.mrf.mxu0
      %v1667 = vadd.f32 0.0, %v1666
      %v1668 = vpop.f32.mrf.mxu0
      %v1669 = vpop.f32.mrf.mxu0
      %v1670 = vadd.f32 0.0, %v1669
      %v1671 = vpop.f32.mrf.mxu0
      %1672 = vmatprep.mubr.bf16.mxu0 0
      %1673 = vmatmul.mubr.bf16.gmra.mxu0 %v1552
      %v1674 = vpop.f32.mrf.mxu0
      %v1675 = vadd.f32 0.0, %v1674
      %v1676 = vpop.f32.mrf.mxu0
      %v1677 = vpop.f32.mrf.mxu0
      %v1678 = vadd.f32 0.0, %v1677
      %v1679 = vpop.f32.mrf.mxu0
      %1680 = vmatprep.mubr.bf16.mxu0 0
      %1681 = vmatmul.mubr.bf16.gmra.mxu0 %v1561
      %v1682 = vpop.f32.mrf.mxu0
      %v1683 = vadd.f32 0.0, %v1682
      %v1684 = vpop.f32.mrf.mxu0
      %v1685 = vpop.f32.mrf.mxu0
      %v1686 = vadd.f32 0.0, %v1685
      %v1687 = vpop.f32.mrf.mxu0
      %1688 = vmatprep.mubr.bf16.mxu0 0
      %1689 = vmatmul.mubr.bf16.gmra.mxu0 %v1570
      %v1690 = vpop.f32.mrf.mxu0
      %v1691 = vadd.f32 0.0, %v1690
      %v1692 = vpop.f32.mrf.mxu0
      %v1693 = vpop.f32.mrf.mxu0
      %v1694 = vadd.f32 0.0, %v1693
      %v1695 = vpop.f32.mrf.mxu0
      %1696 = vdwg.mxu0
      %v1697 = vadd.f32 %v1486, %v1659
      %v1698 = vadd.f32 %v1487, %v1662
      %v1699 = vadd.f32 %v1488, %v1667
      %v1700 = vadd.f32 %v1489, %v1670
      %v1701 = vadd.f32 %v1490, %v1675
      %v1702 = vadd.f32 %v1491, %v1678
      %v1703 = vadd.f32 %v1492, %v1683
      %v1704 = vadd.f32 %v1493, %v1686
      %v1705 = vadd.f32 %v1494, %v1691
      %v1706 = vadd.f32 %v1495, %v1694
      %v1707 = vld [vmem:[%s165 + $0x8] sm:$0x8]
      %s1708 = scalar_lea.vmem %s1, 512
      %v1709 = vld [vmem:[%s1708] sm:$0xf]
      %v1710 = vld [vmem:[%s1708 + $0x4] sm:$0xf]
      %v1711 = vld [vmem:[%s1708 + $0x8] sm:$0xf]
      %v1712 = vld [vmem:[%s1708 + $0xc] sm:$0xf]
      %v1713 = vld [vmem:[%s1708 + $0x10] sm:$0xf]
      %v1714 = vld [vmem:[%s1708 + $0x14] sm:$0xf]
      %v1715 = vld [vmem:[%s1708 + $0x18] sm:$0xf]
      %v1716 = vld [vmem:[%s1708 + $0x1c] sm:$0xf]
      %v1717 = vld [vmem:[%s1708 + $0x20] sm:$0xf]
      %v1718 = vld [vmem:[%s1708 + $0x24] sm:$0xf]
      %v1719 = vld [vmem:[%s1708 + $0x28] sm:$0xf]
      %v1720 = vld [vmem:[%s1708 + $0x2c] sm:$0xf]
      %v1721 = vld [vmem:[%s1708 + $0x30] sm:$0xf]
      %v1722 = vld [vmem:[%s1708 + $0x34] sm:$0xf]
      %v1723 = vld [vmem:[%s1708 + $0x38] sm:$0xf]
      %v1724 = vld [vmem:[%s1708 + $0x3c] sm:$0xf]
      %v1726 = vunpack.c.l.b16 %v1707
      %v1727 = vpack.c.b16 %v1333, %v1726
      %vm1728 = vcmask 1044480
      %v1729 = vrot.slane %v1727, 3
      %v1730 = vrot.slane %v1344, 3
      %v1731 = vsel %vm1728, %v1729, %v1730
      %v1732 = vrot.slane %v1345, 3
      %v1733 = vsel %vm1728, %v1730, %v1732
      %v1734 = vrot.slane %v1346, 3
      %v1735 = vsel %vm1728, %v1732, %v1734
      %v1736 = vrot.slane %v1347, 3
      %v1737 = vsel %vm1728, %v1734, %v1736
      %v1738 = vrot.slane %v1516, 3
      %v1739 = vsel %vm1728, %v1736, %v1738
      %v1761 = vunpack.c.l.b16 %v1709
      %v1762 = vunpack.c.l.b16 %v1710
      %v1763 = vunpack.c.l.b16 %v1711
      %v1764 = vunpack.c.l.b16 %v1712
      %v1765 = vunpack.c.l.b16 %v1713
      %v1766 = vunpack.c.l.b16 %v1714
      %v1767 = vunpack.c.l.b16 %v1715
      %v1768 = vunpack.c.l.b16 %v1716
      %v1769 = vunpack.c.l.b16 %v1717
      %v1770 = vunpack.c.l.b16 %v1718
      %v1771 = vunpack.c.l.b16 %v1719
      %v1772 = vunpack.c.l.b16 %v1720
      %v1773 = vunpack.c.l.b16 %v1721
      %v1774 = vunpack.c.l.b16 %v1722
      %v1775 = vunpack.c.l.b16 %v1723
      %v1776 = vunpack.c.l.b16 %v1724
      %v1777 = vpack.c.b16 %v1762, %v1761
      %v1778 = vpack.c.b16 %v1764, %v1763
      %v1779 = vpack.c.b16 %v1766, %v1765
      %v1780 = vpack.c.b16 %v1768, %v1767
      %v1781 = vpack.c.b16 %v1770, %v1769
      %v1782 = vpack.c.b16 %v1772, %v1771
      %v1783 = vpack.c.b16 %v1774, %v1773
      %v1784 = vpack.c.b16 %v1776, %v1775
      %1793 = vmatprep.subr.bf16.mxu0 0
      %1794 = vmatpush1.bf16.msra.mxu0 %v1784
      %1795 = vmatprep.subr.bf16.mxu0 0
      %1796 = vmatpush1.bf16.msra.mxu0 %v1783
      %1797 = vmatprep.subr.bf16.mxu0 0
      %1798 = vmatpush1.bf16.msra.mxu0 %v1782
      %1799 = vmatprep.subr.bf16.mxu0 0
      %1800 = vmatpush1.bf16.msra.mxu0 %v1781
      %1801 = vmatprep.subr.bf16.mxu0 0
      %1802 = vmatpush1.bf16.msra.mxu0 %v1780
      %1803 = vmatprep.subr.bf16.mxu0 0
      %1804 = vmatpush1.bf16.msra.mxu0 %v1779
      %1805 = vmatprep.subr.bf16.mxu0 0
      %1806 = vmatpush1.bf16.msra.mxu0 %v1778
      %1807 = vmatprep.subr.bf16.mxu0 0
      %1808 = vmatpush1.bf16.msra.mxu0 %v1777
      %1809 = vmatprep.subr.bf16.mxu0 0
      %1810 = vmatpush2.bf16.msra.mxu0 0
      %1811 = vmatprep.subr.bf16.mxu0 0
      %1812 = vmatpush2.bf16.msra.mxu0 0
      %1813 = vmatprep.subr.bf16.mxu0 0
      %1814 = vmatpush2.bf16.msra.mxu0 0
      %1815 = vmatprep.subr.bf16.mxu0 0
      %1816 = vmatpush2.bf16.msra.mxu0 0
      %1817 = vmatprep.subr.bf16.mxu0 0
      %1818 = vmatpush2.bf16.msra.mxu0 0
      %1819 = vmatprep.subr.bf16.mxu0 0
      %1820 = vmatpush2.bf16.msra.mxu0 0
      %1821 = vmatprep.subr.bf16.mxu0 0
      %1822 = vmatpush2.bf16.msra.mxu0 0
      %1823 = vmatprep.subr.bf16.mxu0 0
      %1824 = vmatpush2.bf16.msra.mxu0 0
      %1825 = vmatprep.mubr.bf16.mxu0 0
      %1826 = vmatmul.mubr.bf16.gmra.mxu0 %v1731
      %v1827 = vpop.f32.mrf.mxu0
      %v1828 = vadd.f32 0.0, %v1827
      %v1829 = vpop.f32.mrf.mxu0
      %v1830 = vpop.f32.mrf.mxu0
      %v1831 = vadd.f32 0.0, %v1830
      %v1832 = vpop.f32.mrf.mxu0
      %1833 = vmatprep.mubr.bf16.mxu0 0
      %1834 = vmatmul.mubr.bf16.gmra.mxu0 %v1733
      %v1835 = vpop.f32.mrf.mxu0
      %v1836 = vadd.f32 0.0, %v1835
      %v1837 = vpop.f32.mrf.mxu0
      %v1838 = vpop.f32.mrf.mxu0
      %v1839 = vadd.f32 0.0, %v1838
      %v1840 = vpop.f32.mrf.mxu0
      %1841 = vmatprep.mubr.bf16.mxu0 0
      %1842 = vmatmul.mubr.bf16.gmra.mxu0 %v1735
      %v1843 = vpop.f32.mrf.mxu0
      %v1844 = vadd.f32 0.0, %v1843
      %v1845 = vpop.f32.mrf.mxu0
      %v1846 = vpop.f32.mrf.mxu0
      %v1847 = vadd.f32 0.0, %v1846
      %v1848 = vpop.f32.mrf.mxu0
      %1849 = vmatprep.mubr.bf16.mxu0 0
      %1850 = vmatmul.mubr.bf16.gmra.mxu0 %v1737
      %v1851 = vpop.f32.mrf.mxu0
      %v1852 = vadd.f32 0.0, %v1851
      %v1853 = vpop.f32.mrf.mxu0
      %v1854 = vpop.f32.mrf.mxu0
      %v1855 = vadd.f32 0.0, %v1854
      %v1856 = vpop.f32.mrf.mxu0
      %1857 = vmatprep.mubr.bf16.mxu0 0
      %1858 = vmatmul.mubr.bf16.gmra.mxu0 %v1739
      %v1859 = vpop.f32.mrf.mxu0
      %v1860 = vadd.f32 0.0, %v1859
      %v1861 = vpop.f32.mrf.mxu0
      %v1862 = vpop.f32.mrf.mxu0
      %v1863 = vadd.f32 0.0, %v1862
      %v1864 = vpop.f32.mrf.mxu0
      %1865 = vdwg.mxu0
      %v1866 = vadd.f32 %v1697, %v1828
      %v1867 = vadd.f32 %v1698, %v1831
      %v1868 = vadd.f32 %v1699, %v1836
      %v1869 = vadd.f32 %v1700, %v1839
      %v1870 = vadd.f32 %v1701, %v1844
      %v1871 = vadd.f32 %v1702, %v1847
      %v1872 = vadd.f32 %v1703, %v1852
      %v1873 = vadd.f32 %v1704, %v1855
      %v1874 = vadd.f32 %v1705, %v1860
      %v1875 = vadd.f32 %v1706, %v1863
      %v1876 = vld [vmem:[%s2] sm:$0x1]
      %v1878 = vlaneseq
      %v1879 = vshrl.u32 %v1878, 7
      %v1880 = vsub.s32 0, %v1879
      %v1881 = vrot.slane %v1876, %v1880
      %v1883 = vadd.f32 %v1866, %v1881
      %v1884 = vadd.f32 %v1867, %v1881
      %v1885 = vadd.f32 %v1868, %v1881
      %v1886 = vadd.f32 %v1869, %v1881
      %v1887 = vadd.f32 %v1870, %v1881
      %v1888 = vadd.f32 %v1871, %v1881
      %v1889 = vadd.f32 %v1872, %v1881
      %v1890 = vadd.f32 %v1873, %v1881
      %v1891 = vadd.f32 %v1874, %v1881
      %v1892 = vadd.f32 %v1875, %v1881
      %1893 = vst [vmem:[%s170] sm:$0xff] %v1883
      %1894 = vst [vmem:[%s170 + $0x8] sm:$0xff] %v1884
      %1895 = vst [vmem:[%s170 + $0x10] sm:$0xff] %v1885
      %1896 = vst [vmem:[%s170 + $0x18] sm:$0xff] %v1886
      %1897 = vst [vmem:[%s170 + $0x20] sm:$0xff] %v1887
      %1898 = vst [vmem:[%s170 + $0x28] sm:$0xff] %v1888
      %1899 = vst [vmem:[%s170 + $0x30] sm:$0xff] %v1889
      %1900 = vst [vmem:[%s170 + $0x38] sm:$0xff] %v1890
      %1901 = vst [vmem:[%s170 + $0x40] sm:$0xff] %v1891
      %1902 = vst [vmem:[%s170 + $0x48] sm:$0xff] %v1892
      %p1903 = scmp.lt.s32.totalorder %s14, 1
      %s1904 = scalar_select %p1903, %s14, 1
      %s1905 = smul.addr %s1904, 10
      %s1906 = smul.addr %s1905, 8
      %s1907 = scalar_lea.vmem %s3, %s1906
      // Predicated region
      $region33: #{stem_forward.3} parent=31 // pred_check
        %p1908 = pneg %p100
      $region34: #{stem_forward.3} parent=31 // pred_check_branch
        %1910 = sbr.rel (%p1908) target = $region36
      $region35: #{stem_forward.3} parent=31 // pred_region
        _
      $region36: #{stem_forward.3} parent=31 // pred_fallthru
        _
    $region32: #{stem_forward.3} parent=5 // pred_fallthru
      _
    %p1911 = scmp.le.s32.totalorder 2, %s9
    // Predicated region
    $region37: #{stem_forward.3} parent=5 // pred_check
      %p1912 = pneg %p1911
    $region38: #{stem_forward.3} parent=5 // pred_check_branch
      %1914 = sbr.rel (%p1912) target = $region40
    $region39: #{stem_forward.3} parent=5 // pred_region
      %s1915 = ssub.s32 %s9, 2
      // Predicated region
      $region41: #{stem_forward.3} parent=39 // pred_check
        %p1916 = pneg %p106
      $region42: #{stem_forward.3} parent=39 // pred_check_branch
        %1918 = sbr.rel (%p1916) target = $region44
      $region43: #{stem_forward.3} parent=39 // pred_region
        %p1919 = scmp.lt.s32.totalorder %s15, 1
        %s1920 = scalar_select %p1919, %s15, 1
        %s1921 = smul.addr %s1920, 10
        %s1922 = smul.addr %s1921, 8
        %s1923 = scalar_lea.vmem %s3, %s1922
      $region44: #{stem_forward.3} parent=39 // pred_fallthru
        _
    $region40: #{stem_forward.3} parent=5 // pred_fallthru
      _
  $region6: #{stem_forward.3} parent=0 // loop_footer
    %s13 = sadd.s32 1, %s9
  $region7: #{stem_forward.3} parent=0 // loop_footer_branch
    %8 = sbr.rel target = $region3
  $region8: #{stem_forward.3} parent=0 // loop_exit
    _

</llo_original>
